<compile_context>
chip_gen: v6e
topology: v6e:2x2x1
jax: 0.10.0
libtpu: 0.0.40
codegen_flags: <defaults>
</compile_context>

<pallas_src>
import jax
import jax.numpy as jnp
from jax.experimental import pallas as pl
from jax.experimental.pallas import tpu as pltpu

# ----------------------------- configuration ---------------------------------
B, C, IMG, P = 2, 3, 16, 4            # batch, channels, image size, patch size
D, H, MLPD, L, NCLS = 32, 4, 64, 2, 10
HD = D // H                           # head dim
NP = (IMG // P) ** 2                  # patches per image (16)
T = NP + 1                            # +cls token (17)
T_PAD = ((T + 7) // 8) * 8            # sublane-aligned tokens per image (24)
CPP = C * P * P                       # patch vector length (48)
NCLS_PAD = 128                        # lane-dense head output width

NCHUNK = 2 if B % 2 == 0 else 1       # leading parallel grid axis (v7x: chunk/TC)
BC = B // NCHUNK                      # images per chunk
ROWS = BC * T_PAD                     # resident slab rows per chunk
BCP = ((BC + 7) // 8) * 8             # sublane-padded cls-row count per chunk
EPS = 1e-5                            # nn.LayerNorm default eps
NEG = -1e30


# ----------------------------- in-kernel helpers ------------------------------
def _layernorm(x, gamma, beta):
    # PyTorch LayerNorm: biased variance, eps inside sqrt, f32 statistics.
    mean = jnp.mean(x, axis=-1, keepdims=True)
    var = jnp.mean(jnp.square(x - mean), axis=-1, keepdims=True)
    return (x - mean) * jax.lax.rsqrt(var + EPS) * gamma + beta


def _gelu(x):
    # tanh-form GELU (cubic on VPU + tanh on the EUP slot).
    # TODO(synk): nn.GELU() default is the exact-erf form; tanh variant differs
    # by <~3e-4, below the bf16-matmul noise floor used here.
    c = 0.7978845608028654  # sqrt(2/pi)
    return 0.5 * x * (1.0 + jnp.tanh(c * (x + 0.044715 * (x * x * x))))


# ------------------------- prologue: patch embedding --------------------------
def embed_kernel(patches_ref, wpe_ref, seqadd_ref, out_ref):
    # patches already hold zero rows for cls/pad slots; seqadd holds cls+pos /
    # pos+conv-bias rows, so one matmul + add builds the initial (rows, D) slab.
    out_ref[...] = (
        jnp.dot(patches_ref[...], wpe_ref[...], preferred_element_type=jnp.float32)
        + seqadd_ref[...])


# ------------------------ main kernel: L blocks + head ------------------------
def vit_layers_kernel(slab0_ref,
                      g1_ref, b1_ref, wqkv_ref, bqkv_ref, wo_ref, bo_ref,
                      g2_ref, b2_ref, w1_ref, bm1_ref, w2_ref, bm2_ref,
                      gh_ref, bh_ref, wh_ref, bhb_ref,
                      out_ref, x_sc):
    layer = pl.program_id(1)
    bf16 = jnp.bfloat16

    @pl.when(layer == 0)
    def _init():
        x_sc[...] = slab0_ref[...]          # load this chunk's initial slab

    x = x_sc[...]                           # (ROWS, D) f32, resident across layers

    # ---- multi-head self-attention (pre-LN) ----
    xn = _layernorm(x, g1_ref[...], b1_ref[...])
    # fused lane-dense QKV projection: one (ROWS, 3D) matmul; 1/sqrt(hd) scale is
    # pre-folded into the Q columns of Wqkv / bqkv on the host (exact).
    qkv = jnp.dot(xn.astype(bf16), wqkv_ref[...],
                  preferred_element_type=jnp.float32) + bqkv_ref[...]

    def split_heads(t):
        # (ROWS, D) f32 -> (H*BC, T_PAD, HD) bf16: per-(head, image) blocks.
        parts = [t[:, h * HD:(h + 1) * HD].reshape(BC, T_PAD, HD) for h in range(H)]
        return jnp.concatenate(parts, axis=0).astype(bf16)

    q = split_heads(qkv[:, 0:D])
    k = split_heads(qkv[:, D:2 * D])
    v = split_heads(qkv[:, 2 * D:3 * D])

    # per-(head, image) attention: (H*BC, T_PAD, T_PAD) scores, linear in batch.
    s = jnp.einsum('gne,gme->gnm', q, k, preferred_element_type=jnp.float32)
    # mask padded key columns (token index >= T), generated in-kernel.
    col = jax.lax.broadcasted_iota(jnp.int32, (1, 1, T_PAD), 2)
    s = jnp.where(col < T, s, NEG)
    s = s - jnp.max(s, axis=-1, keepdims=True)
    p = jnp.exp(s)   # TODO(synk): bf16 exp is cheaper on v6e/v7x; kept f32 (v5e-safe)
    p = p * pl.reciprocal(jnp.sum(p, axis=-1, keepdims=True), approx=True)
    o = jnp.einsum('gnm,gme->gne', p.astype(bf16), v,
                   preferred_element_type=jnp.float32)        # (H*BC, T_PAD, HD) f32

    # lane-concatenate heads back to (ROWS, D) (head-major, matching the PyTorch
    # reshape) so the output projection is a single K=D lane-dense matmul.
    om = jnp.concatenate(
        [o[h * BC:(h + 1) * BC].reshape(ROWS, HD) for h in range(H)], axis=-1)
    x = x + jnp.dot(om.astype(bf16), wo_ref[...],
                    preferred_element_type=jnp.float32) + bo_ref[...]

    # ---- MLP (pre-LN) ----
    xn2 = _layernorm(x, g2_ref[...], b2_ref[...])
    hmid = jnp.dot(xn2.astype(bf16), w1_ref[...],
                   preferred_element_type=jnp.float32) + bm1_ref[...]
    hmid = _gelu(hmid)
    # TODO(synk): nn.Dropout(0.1) is an identity at inference; not implemented.
    x = x + jnp.dot(hmid.astype(bf16), w2_ref[...],
                    preferred_element_type=jnp.float32) + bm2_ref[...]
    x_sc[...] = x

    # ---- classification head, last layer only, cls rows only ----
    @pl.when(layer == pl.num_programs(1) - 1)
    def _head():
        # gather the BC cls rows (row b*T_PAD) with a tiny selection matmul
        # (bulletproof lowering, padded to BCP rows for the sublane-aligned output).
        ri = jax.lax.broadcasted_iota(jnp.int32, (BCP, ROWS), 0)
        ci = jax.lax.broadcasted_iota(jnp.int32, (BCP, ROWS), 1)
        sel = (ri * T_PAD == ci).astype(jnp.float32)
        cls_x = jnp.dot(sel, x, preferred_element_type=jnp.float32)   # (BCP, D)
        xh = _layernorm(cls_x, gh_ref[...], bh_ref[...])
        out_ref[...] = (jnp.dot(xh.astype(bf16), wh_ref[...],
                                preferred_element_type=jnp.float32)
                        + bhb_ref[...]).astype(out_ref.dtype)


# ----------------------------------- wrapper -----------------------------------
def vit_forward(x_img, params):
    (conv_w, conv_b, cls_token, pos_emb,
     wqkv_pt, bqkv_pt, wo_pt, bo_pt, w1_pt, b1_pt, w2_pt, b2_pt,
     g1, be1, g2, be2, gh, bh, wh_pt, bhb_pt) = params

    # ---- host-side packing (layout glue only; all hot compute is in-kernel) ----
    # patchify (conv kernel == stride); zero rows for the cls slot and pad tokens.
    xp = x_img.reshape(B, C, IMG // P, P, IMG // P, P)
    xp = xp.transpose(0, 2, 4, 1, 3, 5).reshape(B, NP, CPP)
    patches = jnp.zeros((B, T_PAD, CPP), jnp.float32).at[:, 1:T, :].set(xp)
    patches = patches.reshape(B * T_PAD, CPP).astype(jnp.bfloat16)

    wpe = conv_w.reshape(D, CPP).T.astype(jnp.bfloat16)                 # (CPP, D)

    # additive init rows: cls row gets cls_token+pos[0]; patch rows pos[t]+conv bias;
    # padded token rows stay zero (masked out of attention in-kernel).
    seq_rows = jnp.zeros((T_PAD, D), jnp.float32)
    seq_rows = seq_rows.at[0].set(cls_token[0, 0] + pos_emb[0, 0])
    seq_rows = seq_rows.at[1:T].set(pos_emb[0, 1:T] + conv_b[None, :])
    seqadd = jnp.broadcast_to(seq_rows[None], (B, T_PAD, D)).reshape(B * T_PAD, D)

    # per-layer weights in kernel layouts (x @ W^T), QKV fused and scale-folded.
    scale = 1.0 / (HD ** 0.5)
    wqkv_k = wqkv_pt.transpose(0, 2, 1)                                 # (L, D, 3D)
    wqkv_k = wqkv_k.at[:, :, :D].multiply(scale).astype(jnp.bfloat16)
    bqkv_k = bqkv_pt.reshape(L, 1, 3 * D).at[:, :, :D].multiply(scale)  # f32
    wo_k = wo_pt.transpose(0, 2, 1).astype(jnp.bfloat16)                # (L, D, D)
    bo_k = bo_pt.reshape(L, 1, D)
    w1_k = w1_pt.transpose(0, 2, 1).astype(jnp.bfloat16)                # (L, D, MLPD)
    b1_k = b1_pt.reshape(L, 1, MLPD)
    w2_k = w2_pt.transpose(0, 2, 1).astype(jnp.bfloat16)                # (L, MLPD, D)
    b2_k = b2_pt.reshape(L, 1, D)
    g1_k, be1_k = g1.reshape(L, 1, D), be1.reshape(L, 1, D)
    g2_k, be2_k = g2.reshape(L, 1, D), be2.reshape(L, 1, D)
    gh_k, bh_k = gh.reshape(1, D), bh.reshape(1, D)
    wh_k = (jnp.zeros((D, NCLS_PAD), jnp.float32)
            .at[:, :NCLS].set(wh_pt.T).astype(jnp.bfloat16))
    bhb_k = jnp.zeros((1, NCLS_PAD), jnp.float32).at[:, :NCLS].set(bhb_pt[None])

    # ---- prologue: patch embed + cls/pos -> initial (B*T_PAD, D) slab ----
    slab0 = pl.pallas_call(
        embed_kernel,
        out_shape=jax.ShapeDtypeStruct((B * T_PAD, D), jnp.float32),
    )(patches, wpe, seqadd)

    # ---- main fused kernel: grid = (batch chunks [parallel], layers [arbitrary]) ----
    def const_spec(shape):
        n = len(shape)
        return pl.BlockSpec(shape, lambda c, l: (0,) * n)

    def layer_spec(shape):
        n = len(shape)
        return pl.BlockSpec((None,) + shape, lambda c, l: (l,) + (0,) * n)

    def chunk_spec(shape):
        n = len(shape)
        return pl.BlockSpec(shape, lambda c, l: (c,) + (0,) * (n - 1))

    out = pl.pallas_call(
        vit_layers_kernel,
        out_shape=jax.ShapeDtypeStruct((NCHUNK * BCP, NCLS_PAD), jnp.float32),
        grid=(NCHUNK, L),
        in_specs=[
            chunk_spec((ROWS, D)),                                   # initial slab
            layer_spec((1, D)), layer_spec((1, D)),                  # ln1 g/b
            layer_spec((D, 3 * D)), layer_spec((1, 3 * D)),          # fused qkv w/b
            layer_spec((D, D)), layer_spec((1, D)),                  # out-proj w/b
            layer_spec((1, D)), layer_spec((1, D)),                  # ln2 g/b
            layer_spec((D, MLPD)), layer_spec((1, MLPD)),            # fc1 w/b
            layer_spec((MLPD, D)), layer_spec((1, D)),               # fc2 w/b
            const_spec((1, D)), const_spec((1, D)),                  # head LN g/b
            const_spec((D, NCLS_PAD)), const_spec((1, NCLS_PAD)),    # head w/b
        ],
        out_specs=chunk_spec((BCP, NCLS_PAD)),
        scratch_shapes=[pltpu.VMEM((ROWS, D), jnp.float32)],         # resident slab
        compiler_params=pltpu.CompilerParams(
            dimension_semantics=("parallel", "arbitrary"),
            vmem_limit_bytes=48 * 1024 * 1024),
    )(slab0,
      g1_k, be1_k, wqkv_k, bqkv_k, wo_k, bo_k,
      g2_k, be2_k, w1_k, b1_k, w2_k, b2_k,
      gh_k, bh_k, wh_k, bhb_k)

    # unpad: per chunk take the first BC rows (cls logits) and first NCLS classes.
    logits = out.reshape(NCHUNK, BCP, NCLS_PAD)[:, :BC, :NCLS].reshape(B, NCLS)
    return logits


# ----------------------------------- driver ------------------------------------
if __name__ == "__main__":
    key = jax.random.PRNGKey(0)
    keys = iter(jax.random.split(key, 32))

    def init(shape, scale=0.02):
        return (scale * jax.random.normal(next(keys), shape)).astype(jnp.float32)

    # parameters in their PyTorch-native layouts
    conv_w = init((D, C, P, P))
    conv_b = init((D,))
    cls_token = init((1, 1, D), scale=1.0)          # torch.randn
    pos_emb = init((1, T, D), scale=1.0)            # torch.randn
    wqkv_pt = init((L, 3 * D, D))                   # nn.Linear weight [out, in]
    bqkv_pt = init((L, 3 * D))
    wo_pt = init((L, D, D))
    bo_pt = init((L, D))
    w1_pt = init((L, MLPD, D))
    b1_pt = init((L, MLPD))
    w2_pt = init((L, D, MLPD))
    b2_pt = init((L, D))
    g1 = jnp.ones((L, D), jnp.float32)
    be1 = jnp.zeros((L, D), jnp.float32)
    g2 = jnp.ones((L, D), jnp.float32)
    be2 = jnp.zeros((L, D), jnp.float32)
    gh = jnp.ones((D,), jnp.float32)
    bh = jnp.zeros((D,), jnp.float32)
    wh_pt = init((NCLS, D))
    bhb_pt = init((NCLS,))

    x_img = jax.random.normal(next(keys), (B, C, IMG, IMG), dtype=jnp.float32)

    params = (conv_w, conv_b, cls_token, pos_emb,
              wqkv_pt, bqkv_pt, wo_pt, bo_pt, w1_pt, b1_pt, w2_pt, b2_pt,
              g1, be1, g2, be2, gh, bh, wh_pt, bhb_pt)

    logits = jax.jit(vit_forward)(x_img, params)
    jax.block_until_ready(logits)
    assert logits.shape == (B, NCLS)
    assert bool(jnp.all(jnp.isfinite(logits)))
    print("KERNEL_OK")
</pallas_src>

<mosaic_0001>
module attributes {stable_mosaic.version = 11 : i64} {
  func.func @embed_kernel(%arg0: memref<48x48xbf16, #tpu.memory_space<vmem>>, %arg1: memref<48x32xbf16, #tpu.memory_space<vmem>>, %arg2: memref<48x32xf32, #tpu.memory_space<vmem>>, %arg3: memref<48x32xf32, #tpu.memory_space<vmem>>) attributes {dimension_semantics = [], scalar_prefetch = 0 : i64, scratch_operands = 0 : i64, tpu.core_type = #tpu.core_type<tc>} {
    %c0 = arith.constant 0 : index
    %c0_0 = arith.constant 0 : index
    %0 = vector.load %arg0[%c0, %c0_0] : memref<48x48xbf16, #tpu.memory_space<vmem>>, vector<48x48xbf16>
    %c0_1 = arith.constant 0 : index
    %c0_2 = arith.constant 0 : index
    %1 = vector.load %arg1[%c0_1, %c0_2] : memref<48x32xbf16, #tpu.memory_space<vmem>>, vector<48x32xbf16>
    %cst = arith.constant dense<0.000000e+00> : vector<48x32xf32>
    %2 = tpu.matmul %0, %1, %cst {dimension_numbers = #tpu.dot_dimension_numbers<[1], [0], [0], [1], [0, 0, 1, 1], [], []>} : vector<48x48xbf16>, vector<48x32xbf16>, vector<48x32xf32> -> vector<48x32xf32>
    %c0_3 = arith.constant 0 : index
    %c0_4 = arith.constant 0 : index
    %3 = vector.load %arg2[%c0_3, %c0_4] : memref<48x32xf32, #tpu.memory_space<vmem>>, vector<48x32xf32>
    %4 = arith.addf %2, %3 : vector<48x32xf32>
    %c0_5 = arith.constant 0 : index
    %c0_6 = arith.constant 0 : index
    %5 = vector.load %arg3[%c0_5, %c0_6] : memref<48x32xf32, #tpu.memory_space<vmem>>, vector<48x32xf32>
    tpu.vector_store %arg3[%c0_5, %c0_6], %4 {strides = array<i32>} : memref<48x32xf32, #tpu.memory_space<vmem>>, vector<48x32xf32>,
    return
  }
}

module attributes {stable_mosaic.version = 11 : i64} {
  func.func @vit_layers_kernel(%arg0: i32, %arg1: i32, %arg2: memref<24x32xf32, #tpu.memory_space<vmem>>, %arg3: memref<1x1x32xf32, #tpu.memory_space<vmem>>, %arg4: memref<1x1x32xf32, #tpu.memory_space<vmem>>, %arg5: memref<1x32x96xbf16, #tpu.memory_space<vmem>>, %arg6: memref<1x1x96xf32, #tpu.memory_space<vmem>>, %arg7: memref<1x32x32xbf16, #tpu.memory_space<vmem>>, %arg8: memref<1x1x32xf32, #tpu.memory_space<vmem>>, %arg9: memref<1x1x32xf32, #tpu.memory_space<vmem>>, %arg10: memref<1x1x32xf32, #tpu.memory_space<vmem>>, %arg11: memref<1x32x64xbf16, #tpu.memory_space<vmem>>, %arg12: memref<1x1x64xf32, #tpu.memory_space<vmem>>, %arg13: memref<1x64x32xbf16, #tpu.memory_space<vmem>>, %arg14: memref<1x1x32xf32, #tpu.memory_space<vmem>>, %arg15: memref<1x32xf32, #tpu.memory_space<vmem>>, %arg16: memref<1x32xf32, #tpu.memory_space<vmem>>, %arg17: memref<32x128xbf16, #tpu.memory_space<vmem>>, %arg18: memref<1x128xf32, #tpu.memory_space<vmem>>, %arg19: memref<8x128xf32, #tpu.memory_space<vmem>>, %arg20: memref<24x32xf32, #tpu.memory_space<vmem>>) attributes {dimension_semantics = [#tpu.dimension_semantics<parallel>, #tpu.dimension_semantics<arbitrary>], iteration_bounds = array<i64: 2, 2>, scalar_prefetch = 0 : i64, scratch_operands = 1 : i64, tpu.core_type = #tpu.core_type<tc>, window_params = [{transform_indices = @transform_0, window_bounds = array<i64: 24, 32>}, {transform_indices = @transform_1, window_bounds = array<i64: 1, 1, 32>}, {transform_indices = @transform_2, window_bounds = array<i64: 1, 1, 32>}, {transform_indices = @transform_3, window_bounds = array<i64: 1, 32, 96>}, {transform_indices = @transform_4, window_bounds = array<i64: 1, 1, 96>}, {transform_indices = @transform_5, window_bounds = array<i64: 1, 32, 32>}, {transform_indices = @transform_6, window_bounds = array<i64: 1, 1, 32>}, {transform_indices = @transform_7, window_bounds = array<i64: 1, 1, 32>}, {transform_indices = @transform_8, window_bounds = array<i64: 1, 1, 32>}, {transform_indices = @transform_9, window_bounds = array<i64: 1, 32, 64>}, {transform_indices = @transform_10, window_bounds = array<i64: 1, 1, 64>}, {transform_indices = @transform_11, window_bounds = array<i64: 1, 64, 32>}, {transform_indices = @transform_12, window_bounds = array<i64: 1, 1, 32>}, {pipeline_mode = #tpu.pipeline_mode<synchronous>, transform_indices = @transform_13, window_bounds = array<i64: 1, 32>}, {pipeline_mode = #tpu.pipeline_mode<synchronous>, transform_indices = @transform_14, window_bounds = array<i64: 1, 32>}, {pipeline_mode = #tpu.pipeline_mode<synchronous>, transform_indices = @transform_15, window_bounds = array<i64: 32, 128>}, {pipeline_mode = #tpu.pipeline_mode<synchronous>, transform_indices = @transform_16, window_bounds = array<i64: 1, 128>}, {transform_indices = @transform_17, window_bounds = array<i64: 8, 128>}]} {
    %c0_i32 = arith.constant 0 : i32
    %0 = arith.cmpi eq, %arg1, %c0_i32 : i32
    %1 = arith.extui %0 : i1 to i32
    %c0_i32_0 = arith.constant 0 : i32
    %2 = arith.cmpi ne, %1, %c0_i32_0 : i32
    scf.if %2 {
      %c0_63 = arith.constant 0 : index
      %c0_64 = arith.constant 0 : index
      %169 = vector.load %arg2[%c0_63, %c0_64] : memref<24x32xf32, #tpu.memory_space<vmem>>, vector<24x32xf32>
      %c0_65 = arith.constant 0 : index
      %c0_66 = arith.constant 0 : index
      %170 = vector.load %arg20[%c0_65, %c0_66] : memref<24x32xf32, #tpu.memory_space<vmem>>, vector<24x32xf32>
      tpu.vector_store %arg20[%c0_65, %c0_66], %169 {strides = array<i32>} : memref<24x32xf32, #tpu.memory_space<vmem>>, vector<24x32xf32>,
    } else {
    }
    %c0 = arith.constant 0 : index
    %c0_1 = arith.constant 0 : index
    %3 = vector.load %arg20[%c0, %c0_1] : memref<24x32xf32, #tpu.memory_space<vmem>>, vector<24x32xf32>
    %c0_2 = arith.constant 0 : index
    %c0_3 = arith.constant 0 : index
    %c0_4 = arith.constant 0 : index
    %4 = vector.load %arg3[%c0_2, %c0_3, %c0_4] : memref<1x1x32xf32, #tpu.memory_space<vmem>>, vector<1x1x32xf32>
    %5 = vector.shape_cast %4 : vector<1x1x32xf32> to vector<1x32xf32>
    %c0_5 = arith.constant 0 : index
    %c0_6 = arith.constant 0 : index
    %c0_7 = arith.constant 0 : index
    %6 = vector.load %arg4[%c0_5, %c0_6, %c0_7] : memref<1x1x32xf32, #tpu.memory_space<vmem>>, vector<1x1x32xf32>
    %7 = vector.shape_cast %6 : vector<1x1x32xf32> to vector<1x32xf32>
    %cst = arith.constant dense<0.000000e+00> : vector<24xf32>
    %8 = vector.multi_reduction <add>, %3, %cst [1] : vector<24x32xf32> to vector<24xf32>
    %9 = vector.shape_cast %8 : vector<24xf32> to vector<24x1xf32>
    %cst_8 = arith.constant 3.200000e+01 : f32
    %10 = vector.broadcast %cst_8 : f32 to vector<24x1xf32>
    %11 = arith.divf %9, %10 : vector<24x1xf32>
    %12 = vector.broadcast %11 : vector<24x1xf32> to vector<24x32xf32>
    %13 = arith.subf %3, %12 : vector<24x32xf32>
    %14 = arith.mulf %13, %13 : vector<24x32xf32>
    %cst_9 = arith.constant dense<0.000000e+00> : vector<24xf32>
    %15 = vector.multi_reduction <add>, %14, %cst_9 [1] : vector<24x32xf32> to vector<24xf32>
    %16 = vector.shape_cast %15 : vector<24xf32> to vector<24x1xf32>
    %cst_10 = arith.constant 3.200000e+01 : f32
    %17 = vector.broadcast %cst_10 : f32 to vector<24x1xf32>
    %18 = arith.divf %16, %17 : vector<24x1xf32>
    %19 = vector.broadcast %11 : vector<24x1xf32> to vector<24x32xf32>
    %20 = arith.subf %3, %19 : vector<24x32xf32>
    %cst_11 = arith.constant 9.99999974E-6 : f32
    %21 = vector.broadcast %cst_11 : f32 to vector<24x1xf32>
    %22 = arith.addf %18, %21 : vector<24x1xf32>
    %23 = math.rsqrt %22 : vector<24x1xf32>
    %24 = vector.broadcast %23 : vector<24x1xf32> to vector<24x32xf32>
    %25 = arith.mulf %20, %24 : vector<24x32xf32>
    %26 = vector.broadcast %5 : vector<1x32xf32> to vector<24x32xf32>
    %27 = arith.mulf %25, %26 : vector<24x32xf32>
    %28 = vector.broadcast %7 : vector<1x32xf32> to vector<24x32xf32>
    %29 = arith.addf %27, %28 : vector<24x32xf32>
    %30 = arith.truncf %29 : vector<24x32xf32> to vector<24x32xbf16>
    %c0_12 = arith.constant 0 : index
    %c0_13 = arith.constant 0 : index
    %c0_14 = arith.constant 0 : index
    %31 = vector.load %arg5[%c0_12, %c0_13, %c0_14] : memref<1x32x96xbf16, #tpu.memory_space<vmem>>, vector<1x32x96xbf16>
    %32 = vector.shape_cast %31 : vector<1x32x96xbf16> to vector<32x96xbf16>
    %cst_15 = arith.constant dense<0.000000e+00> : vector<24x96xf32>
    %33 = tpu.matmul %30, %32, %cst_15 {dimension_numbers = #tpu.dot_dimension_numbers<[1], [0], [0], [1], [0, 0, 1, 1], [], []>} : vector<24x32xbf16>, vector<32x96xbf16>, vector<24x96xf32> -> vector<24x96xf32>
    %c0_16 = arith.constant 0 : index
    %c0_17 = arith.constant 0 : index
    %c0_18 = arith.constant 0 : index
    %34 = vector.load %arg6[%c0_16, %c0_17, %c0_18] : memref<1x1x96xf32, #tpu.memory_space<vmem>>, vector<1x1x96xf32>
    %35 = vector.shape_cast %34 : vector<1x1x96xf32> to vector<1x96xf32>
    %36 = vector.broadcast %35 : vector<1x96xf32> to vector<24x96xf32>
    %37 = arith.addf %33, %36 : vector<24x96xf32>
    %38 = vector.extract_strided_slice %37 {offsets = [0, 0], sizes = [24, 32], strides = [1, 1]} : vector<24x96xf32> to vector<24x32xf32>
    %39 = vector.extract_strided_slice %38 {offsets = [0, 0], sizes = [24, 8], strides = [1, 1]} : vector<24x32xf32> to vector<24x8xf32>
    %40 = vector.shape_cast %39 : vector<24x8xf32> to vector<1x24x8xf32>
    %41 = vector.extract_strided_slice %38 {offsets = [0, 8], sizes = [24, 8], strides = [1, 1]} : vector<24x32xf32> to vector<24x8xf32>
    %42 = vector.shape_cast %41 : vector<24x8xf32> to vector<1x24x8xf32>
    %43 = vector.extract_strided_slice %38 {offsets = [0, 16], sizes = [24, 8], strides = [1, 1]} : vector<24x32xf32> to vector<24x8xf32>
    %44 = vector.shape_cast %43 : vector<24x8xf32> to vector<1x24x8xf32>
    %45 = vector.extract_strided_slice %38 {offsets = [0, 24], sizes = [24, 8], strides = [1, 1]} : vector<24x32xf32> to vector<24x8xf32>
    %46 = vector.shape_cast %45 : vector<24x8xf32> to vector<1x24x8xf32>
    %47 = tpu.concatenate %40, %42, %44, %46 in 0 : vector<1x24x8xf32>, vector<1x24x8xf32>, vector<1x24x8xf32>, vector<1x24x8xf32> -> vector<4x24x8xf32>
    %48 = arith.truncf %47 : vector<4x24x8xf32> to vector<4x24x8xbf16>
    %49 = vector.extract_strided_slice %37 {offsets = [0, 32], sizes = [24, 32], strides = [1, 1]} : vector<24x96xf32> to vector<24x32xf32>
    %50 = vector.extract_strided_slice %49 {offsets = [0, 0], sizes = [24, 8], strides = [1, 1]} : vector<24x32xf32> to vector<24x8xf32>
    %51 = vector.shape_cast %50 : vector<24x8xf32> to vector<1x24x8xf32>
    %52 = vector.extract_strided_slice %49 {offsets = [0, 8], sizes = [24, 8], strides = [1, 1]} : vector<24x32xf32> to vector<24x8xf32>
    %53 = vector.shape_cast %52 : vector<24x8xf32> to vector<1x24x8xf32>
    %54 = vector.extract_strided_slice %49 {offsets = [0, 16], sizes = [24, 8], strides = [1, 1]} : vector<24x32xf32> to vector<24x8xf32>
    %55 = vector.shape_cast %54 : vector<24x8xf32> to vector<1x24x8xf32>
    %56 = vector.extract_strided_slice %49 {offsets = [0, 24], sizes = [24, 8], strides = [1, 1]} : vector<24x32xf32> to vector<24x8xf32>
    %57 = vector.shape_cast %56 : vector<24x8xf32> to vector<1x24x8xf32>
    %58 = tpu.concatenate %51, %53, %55, %57 in 0 : vector<1x24x8xf32>, vector<1x24x8xf32>, vector<1x24x8xf32>, vector<1x24x8xf32> -> vector<4x24x8xf32>
    %59 = arith.truncf %58 : vector<4x24x8xf32> to vector<4x24x8xbf16>
    %60 = vector.extract_strided_slice %37 {offsets = [0, 64], sizes = [24, 32], strides = [1, 1]} : vector<24x96xf32> to vector<24x32xf32>
    %61 = vector.extract_strided_slice %60 {offsets = [0, 0], sizes = [24, 8], strides = [1, 1]} : vector<24x32xf32> to vector<24x8xf32>
    %62 = vector.shape_cast %61 : vector<24x8xf32> to vector<1x24x8xf32>
    %63 = vector.extract_strided_slice %60 {offsets = [0, 8], sizes = [24, 8], strides = [1, 1]} : vector<24x32xf32> to vector<24x8xf32>
    %64 = vector.shape_cast %63 : vector<24x8xf32> to vector<1x24x8xf32>
    %65 = vector.extract_strided_slice %60 {offsets = [0, 16], sizes = [24, 8], strides = [1, 1]} : vector<24x32xf32> to vector<24x8xf32>
    %66 = vector.shape_cast %65 : vector<24x8xf32> to vector<1x24x8xf32>
    %67 = vector.extract_strided_slice %60 {offsets = [0, 24], sizes = [24, 8], strides = [1, 1]} : vector<24x32xf32> to vector<24x8xf32>
    %68 = vector.shape_cast %67 : vector<24x8xf32> to vector<1x24x8xf32>
    %69 = tpu.concatenate %62, %64, %66, %68 in 0 : vector<1x24x8xf32>, vector<1x24x8xf32>, vector<1x24x8xf32>, vector<1x24x8xf32> -> vector<4x24x8xf32>
    %70 = arith.truncf %69 : vector<4x24x8xf32> to vector<4x24x8xbf16>
    "tpu.trace_start"() <{level = 10 : i32, message = "gne,gme->gnm"}> : () -> ()
    %cst_19 = arith.constant dense<0.000000e+00> : vector<4x24x24xf32>
    %71 = tpu.matmul %48, %59, %cst_19 {dimension_numbers = #tpu.dot_dimension_numbers<[2], [2], [1], [1], [0, 0, 0, 1, 1, 1], [0], [0]>} : vector<4x24x8xbf16>, vector<4x24x8xbf16>, vector<4x24x24xf32> -> vector<4x24x24xf32>
    "tpu.trace_stop"() : () -> ()
    %72 = tpu.iota {dimensions = array<i32: 2>} : vector<1x1x24xi32>
    %c17_i32 = arith.constant 17 : i32
    %73 = vector.broadcast %c17_i32 : i32 to vector<1x1x24xi32>
    %74 = arith.cmpi slt, %72, %73 : vector<1x1x24xi32>
    %cst_20 = arith.constant -1.000000e+30 : f32
    %75 = vector.shape_cast %74 : vector<1x1x24xi1> to vector<1x1x24xi1>
    %76 = vector.broadcast %75 : vector<1x1x24xi1> to vector<4x24x24xi1>
    %77 = vector.broadcast %cst_20 : f32 to vector<4x24x24xf32>
    %78 = arith.select %76, %71, %77 : vector<4x24x24xi1>, vector<4x24x24xf32>
    %cst_21 = arith.constant dense<0xFF800000> : vector<4x24xf32>
    %79 = vector.multi_reduction <maximumf>, %78, %cst_21 [2] : vector<4x24x24xf32> to vector<4x24xf32>
    %80 = vector.shape_cast %79 : vector<4x24xf32> to vector<4x24x1xf32>
    %81 = vector.broadcast %80 : vector<4x24x1xf32> to vector<4x24x24xf32>
    %82 = arith.subf %78, %81 : vector<4x24x24xf32>
    %83 = math.exp %82 : vector<4x24x24xf32>
    %cst_22 = arith.constant dense<0.000000e+00> : vector<4x24xf32>
    %84 = vector.multi_reduction <add>, %83, %cst_22 [2] : vector<4x24x24xf32> to vector<4x24xf32>
    %85 = vector.shape_cast %84 : vector<4x24xf32> to vector<4x24x1xf32>
    %86 = tpu.reciprocal %85 {approx = true} : vector<4x24x1xf32> -> vector<4x24x1xf32>
    %87 = vector.broadcast %86 : vector<4x24x1xf32> to vector<4x24x24xf32>
    %88 = arith.mulf %83, %87 : vector<4x24x24xf32>
    %89 = arith.truncf %88 : vector<4x24x24xf32> to vector<4x24x24xbf16>
    "tpu.trace_start"() <{level = 10 : i32, message = "gnm,gme->gne"}> : () -> ()
    %cst_23 = arith.constant dense<0.000000e+00> : vector<4x24x8xf32>
    %90 = tpu.matmul %89, %70, %cst_23 {dimension_numbers = #tpu.dot_dimension_numbers<[2], [1], [1], [2], [0, 0, 0, 1, 1, 2], [0], [0]>} : vector<4x24x24xbf16>, vector<4x24x8xbf16>, vector<4x24x8xf32> -> vector<4x24x8xf32>
    "tpu.trace_stop"() : () -> ()
    %91 = vector.extract_strided_slice %90 {offsets = [0, 0, 0], sizes = [1, 24, 8], strides = [1, 1, 1]} : vector<4x24x8xf32> to vector<1x24x8xf32>
    %92 = vector.shape_cast %91 : vector<1x24x8xf32> to vector<24x8xf32>
    %93 = vector.extract_strided_slice %90 {offsets = [1, 0, 0], sizes = [1, 24, 8], strides = [1, 1, 1]} : vector<4x24x8xf32> to vector<1x24x8xf32>
    %94 = vector.shape_cast %93 : vector<1x24x8xf32> to vector<24x8xf32>
    %95 = vector.extract_strided_slice %90 {offsets = [2, 0, 0], sizes = [1, 24, 8], strides = [1, 1, 1]} : vector<4x24x8xf32> to vector<1x24x8xf32>
    %96 = vector.shape_cast %95 : vector<1x24x8xf32> to vector<24x8xf32>
    %97 = vector.extract_strided_slice %90 {offsets = [3, 0, 0], sizes = [1, 24, 8], strides = [1, 1, 1]} : vector<4x24x8xf32> to vector<1x24x8xf32>
    %98 = vector.shape_cast %97 : vector<1x24x8xf32> to vector<24x8xf32>
    %99 = tpu.concatenate %92, %94, %96, %98 in 1 : vector<24x8xf32>, vector<24x8xf32>, vector<24x8xf32>, vector<24x8xf32> -> vector<24x32xf32>
    %100 = arith.truncf %99 : vector<24x32xf32> to vector<24x32xbf16>
    %c0_24 = arith.constant 0 : index
    %c0_25 = arith.constant 0 : index
    %c0_26 = arith.constant 0 : index
    %101 = vector.load %arg7[%c0_24, %c0_25, %c0_26] : memref<1x32x32xbf16, #tpu.memory_space<vmem>>, vector<1x32x32xbf16>
    %102 = vector.shape_cast %101 : vector<1x32x32xbf16> to vector<32x32xbf16>
    %cst_27 = arith.constant dense<0.000000e+00> : vector<24x32xf32>
    %103 = tpu.matmul %100, %102, %cst_27 {dimension_numbers = #tpu.dot_dimension_numbers<[1], [0], [0], [1], [0, 0, 1, 1], [], []>} : vector<24x32xbf16>, vector<32x32xbf16>, vector<24x32xf32> -> vector<24x32xf32>
    %104 = arith.addf %3, %103 : vector<24x32xf32>
    %c0_28 = arith.constant 0 : index
    %c0_29 = arith.constant 0 : index
    %c0_30 = arith.constant 0 : index
    %105 = vector.load %arg8[%c0_28, %c0_29, %c0_30] : memref<1x1x32xf32, #tpu.memory_space<vmem>>, vector<1x1x32xf32>
    %106 = vector.shape_cast %105 : vector<1x1x32xf32> to vector<1x32xf32>
    %107 = vector.broadcast %106 : vector<1x32xf32> to vector<24x32xf32>
    %108 = arith.addf %104, %107 : vector<24x32xf32>
    %c0_31 = arith.constant 0 : index
    %c0_32 = arith.constant 0 : index
    %c0_33 = arith.constant 0 : index
    %109 = vector.load %arg9[%c0_31, %c0_32, %c0_33] : memref<1x1x32xf32, #tpu.memory_space<vmem>>, vector<1x1x32xf32>
    %110 = vector.shape_cast %109 : vector<1x1x32xf32> to vector<1x32xf32>
    %c0_34 = arith.constant 0 : index
    %c0_35 = arith.constant 0 : index
    %c0_36 = arith.constant 0 : index
    %111 = vector.load %arg10[%c0_34, %c0_35, %c0_36] : memref<1x1x32xf32, #tpu.memory_space<vmem>>, vector<1x1x32xf32>
    %112 = vector.shape_cast %111 : vector<1x1x32xf32> to vector<1x32xf32>
    %cst_37 = arith.constant dense<0.000000e+00> : vector<24xf32>
    %113 = vector.multi_reduction <add>, %108, %cst_37 [1] : vector<24x32xf32> to vector<24xf32>
    %114 = vector.shape_cast %113 : vector<24xf32> to vector<24x1xf32>
    %cst_38 = arith.constant 3.200000e+01 : f32
    %115 = vector.broadcast %cst_38 : f32 to vector<24x1xf32>
    %116 = arith.divf %114, %115 : vector<24x1xf32>
    %117 = vector.broadcast %116 : vector<24x1xf32> to vector<24x32xf32>
    %118 = arith.subf %108, %117 : vector<24x32xf32>
    %119 = arith.mulf %118, %118 : vector<24x32xf32>
    %cst_39 = arith.constant dense<0.000000e+00> : vector<24xf32>
    %120 = vector.multi_reduction <add>, %119, %cst_39 [1] : vector<24x32xf32> to vector<24xf32>
    %121 = vector.shape_cast %120 : vector<24xf32> to vector<24x1xf32>
    %cst_40 = arith.constant 3.200000e+01 : f32
    %122 = vector.broadcast %cst_40 : f32 to vector<24x1xf32>
    %123 = arith.divf %121, %122 : vector<24x1xf32>
    %124 = vector.broadcast %116 : vector<24x1xf32> to vector<24x32xf32>
    %125 = arith.subf %108, %124 : vector<24x32xf32>
    %cst_41 = arith.constant 9.99999974E-6 : f32
    %126 = vector.broadcast %cst_41 : f32 to vector<24x1xf32>
    %127 = arith.addf %123, %126 : vector<24x1xf32>
    %128 = math.rsqrt %127 : vector<24x1xf32>
    %129 = vector.broadcast %128 : vector<24x1xf32> to vector<24x32xf32>
    %130 = arith.mulf %125, %129 : vector<24x32xf32>
    %131 = vector.broadcast %110 : vector<1x32xf32> to vector<24x32xf32>
    %132 = arith.mulf %130, %131 : vector<24x32xf32>
    %133 = vector.broadcast %112 : vector<1x32xf32> to vector<24x32xf32>
    %134 = arith.addf %132, %133 : vector<24x32xf32>
    %135 = arith.truncf %134 : vector<24x32xf32> to vector<24x32xbf16>
    %c0_42 = arith.constant 0 : index
    %c0_43 = arith.constant 0 : index
    %c0_44 = arith.constant 0 : index
    %136 = vector.load %arg11[%c0_42, %c0_43, %c0_44] : memref<1x32x64xbf16, #tpu.memory_space<vmem>>, vector<1x32x64xbf16>
    %137 = vector.shape_cast %136 : vector<1x32x64xbf16> to vector<32x64xbf16>
    %cst_45 = arith.constant dense<0.000000e+00> : vector<24x64xf32>
    %138 = tpu.matmul %135, %137, %cst_45 {dimension_numbers = #tpu.dot_dimension_numbers<[1], [0], [0], [1], [0, 0, 1, 1], [], []>} : vector<24x32xbf16>, vector<32x64xbf16>, vector<24x64xf32> -> vector<24x64xf32>
    %c0_46 = arith.constant 0 : index
    %c0_47 = arith.constant 0 : index
    %c0_48 = arith.constant 0 : index
    %139 = vector.load %arg12[%c0_46, %c0_47, %c0_48] : memref<1x1x64xf32, #tpu.memory_space<vmem>>, vector<1x1x64xf32>
    %140 = vector.shape_cast %139 : vector<1x1x64xf32> to vector<1x64xf32>
    %141 = vector.broadcast %140 : vector<1x64xf32> to vector<24x64xf32>
    %142 = arith.addf %138, %141 : vector<24x64xf32>
    %cst_49 = arith.constant 5.000000e-01 : f32
    %143 = vector.broadcast %cst_49 : f32 to vector<24x64xf32>
    %144 = arith.mulf %143, %142 : vector<24x64xf32>
    %145 = arith.mulf %142, %142 : vector<24x64xf32>
    %146 = arith.mulf %145, %142 : vector<24x64xf32>
    %cst_50 = arith.constant 4.471500e-02 : f32
    %147 = vector.broadcast %cst_50 : f32 to vector<24x64xf32>
    %148 = arith.mulf %147, %146 : vector<24x64xf32>
    %149 = arith.addf %142, %148 : vector<24x64xf32>
    %cst_51 = arith.constant 0.797884583 : f32
    %150 = vector.broadcast %cst_51 : f32 to vector<24x64xf32>
    %151 = arith.mulf %150, %149 : vector<24x64xf32>
    %152 = math.tanh %151 : vector<24x64xf32>
    %cst_52 = arith.constant 1.000000e+00 : f32
    %153 = vector.broadcast %cst_52 : f32 to vector<24x64xf32>
    %154 = arith.addf %153, %152 : vector<24x64xf32>
    %155 = arith.mulf %144, %154 : vector<24x64xf32>
    %156 = arith.truncf %155 : vector<24x64xf32> to vector<24x64xbf16>
    %c0_53 = arith.constant 0 : index
    %c0_54 = arith.constant 0 : index
    %c0_55 = arith.constant 0 : index
    %157 = vector.load %arg13[%c0_53, %c0_54, %c0_55] : memref<1x64x32xbf16, #tpu.memory_space<vmem>>, vector<1x64x32xbf16>
    %158 = vector.shape_cast %157 : vector<1x64x32xbf16> to vector<64x32xbf16>
    %cst_56 = arith.constant dense<0.000000e+00> : vector<24x32xf32>
    %159 = tpu.matmul %156, %158, %cst_56 {dimension_numbers = #tpu.dot_dimension_numbers<[1], [0], [0], [1], [0, 0, 1, 1], [], []>} : vector<24x64xbf16>, vector<64x32xbf16>, vector<24x32xf32> -> vector<24x32xf32>
    %160 = arith.addf %108, %159 : vector<24x32xf32>
    %c0_57 = arith.constant 0 : index
    %c0_58 = arith.constant 0 : index
    %c0_59 = arith.constant 0 : index
    %161 = vector.load %arg14[%c0_57, %c0_58, %c0_59] : memref<1x1x32xf32, #tpu.memory_space<vmem>>, vector<1x1x32xf32>
    %162 = vector.shape_cast %161 : vector<1x1x32xf32> to vector<1x32xf32>
    %163 = vector.broadcast %162 : vector<1x32xf32> to vector<24x32xf32>
    %164 = arith.addf %160, %163 : vector<24x32xf32>
    %c0_60 = arith.constant 0 : index
    %c0_61 = arith.constant 0 : index
    %165 = vector.load %arg20[%c0_60, %c0_61] : memref<24x32xf32, #tpu.memory_space<vmem>>, vector<24x32xf32>
    tpu.vector_store %arg20[%c0_60, %c0_61], %164 {strides = array<i32>} : memref<24x32xf32, #tpu.memory_space<vmem>>, vector<24x32xf32>,
    %c1_i32 = arith.constant 1 : i32
    %166 = arith.cmpi eq, %arg1, %c1_i32 : i32
    %167 = arith.extui %166 : i1 to i32
    %c0_i32_62 = arith.constant 0 : i32
    %168 = arith.cmpi ne, %167, %c0_i32_62 : i32
    scf.if %168 {
      %169 = tpu.iota {dimensions = array<i32: 0>} : vector<8x24xi32>
      %170 = tpu.iota {dimensions = array<i32: 1>} : vector<8x24xi32>
      %c24_i32 = arith.constant 24 : i32
      %171 = vector.broadcast %c24_i32 : i32 to vector<8x24xi32>
      %172 = arith.muli %169, %171 : vector<8x24xi32>
      %173 = arith.cmpi eq, %172, %170 : vector<8x24xi32>
      %174 = arith.extui %173 : vector<8x24xi1> to vector<8x24xi32>
      %175 = arith.sitofp %174 : vector<8x24xi32> to vector<8x24xf32>
      %cst_63 = arith.constant dense<0.000000e+00> : vector<8x32xf32>
      %176 = tpu.matmul %175, %164, %cst_63 {dimension_numbers = #tpu.dot_dimension_numbers<[1], [0], [0], [1], [0, 0, 1, 1], [], []>} : vector<8x24xf32>, vector<24x32xf32>, vector<8x32xf32> -> vector<8x32xf32>
      %c0_64 = arith.constant 0 : index
      %c0_65 = arith.constant 0 : index
      %177 = vector.load %arg15[%c0_64, %c0_65] : memref<1x32xf32, #tpu.memory_space<vmem>>, vector<1x32xf32>
      %c0_66 = arith.constant 0 : index
      %c0_67 = arith.constant 0 : index
      %178 = vector.load %arg16[%c0_66, %c0_67] : memref<1x32xf32, #tpu.memory_space<vmem>>, vector<1x32xf32>
      %cst_68 = arith.constant dense<0.000000e+00> : vector<8xf32>
      %179 = vector.multi_reduction <add>, %176, %cst_68 [1] : vector<8x32xf32> to vector<8xf32>
      %180 = vector.shape_cast %179 : vector<8xf32> to vector<8x1xf32>
      %cst_69 = arith.constant 3.200000e+01 : f32
      %181 = vector.broadcast %cst_69 : f32 to vector<8x1xf32>
      %182 = arith.divf %180, %181 : vector<8x1xf32>
      %183 = vector.broadcast %182 : vector<8x1xf32> to vector<8x32xf32>
      %184 = arith.subf %176, %183 : vector<8x32xf32>
      %185 = arith.mulf %184, %184 : vector<8x32xf32>
      %cst_70 = arith.constant dense<0.000000e+00> : vector<8xf32>
      %186 = vector.multi_reduction <add>, %185, %cst_70 [1] : vector<8x32xf32> to vector<8xf32>
      %187 = vector.shape_cast %186 : vector<8xf32> to vector<8x1xf32>
      %cst_71 = arith.constant 3.200000e+01 : f32
      %188 = vector.broadcast %cst_71 : f32 to vector<8x1xf32>
      %189 = arith.divf %187, %188 : vector<8x1xf32>
      %190 = vector.broadcast %182 : vector<8x1xf32> to vector<8x32xf32>
      %191 = arith.subf %176, %190 : vector<8x32xf32>
      %cst_72 = arith.constant 9.99999974E-6 : f32
      %192 = vector.broadcast %cst_72 : f32 to vector<8x1xf32>
      %193 = arith.addf %189, %192 : vector<8x1xf32>
      %194 = math.rsqrt %193 : vector<8x1xf32>
      %195 = vector.broadcast %194 : vector<8x1xf32> to vector<8x32xf32>
      %196 = arith.mulf %191, %195 : vector<8x32xf32>
      %197 = vector.broadcast %177 : vector<1x32xf32> to vector<8x32xf32>
      %198 = arith.mulf %196, %197 : vector<8x32xf32>
      %199 = vector.broadcast %178 : vector<1x32xf32> to vector<8x32xf32>
      %200 = arith.addf %198, %199 : vector<8x32xf32>
      %201 = arith.truncf %200 : vector<8x32xf32> to vector<8x32xbf16>
      %c0_73 = arith.constant 0 : index
      %c0_74 = arith.constant 0 : index
      %202 = vector.load %arg17[%c0_73, %c0_74] : memref<32x128xbf16, #tpu.memory_space<vmem>>, vector<32x128xbf16>
      %cst_75 = arith.constant dense<0.000000e+00> : vector<8x128xf32>
      %203 = tpu.matmul %201, %202, %cst_75 {dimension_numbers = #tpu.dot_dimension_numbers<[1], [0], [0], [1], [0, 0, 1, 1], [], []>} : vector<8x32xbf16>, vector<32x128xbf16>, vector<8x128xf32> -> vector<8x128xf32>
      %c0_76 = arith.constant 0 : index
      %c0_77 = arith.constant 0 : index
      %204 = vector.load %arg18[%c0_76, %c0_77] : memref<1x128xf32, #tpu.memory_space<vmem>>, vector<1x128xf32>
      %205 = vector.broadcast %204 : vector<1x128xf32> to vector<8x128xf32>
      %206 = arith.addf %203, %205 : vector<8x128xf32>
      %c0_78 = arith.constant 0 : index
      %c0_79 = arith.constant 0 : index
      %207 = vector.load %arg19[%c0_78, %c0_79] : memref<8x128xf32, #tpu.memory_space<vmem>>, vector<8x128xf32>
      tpu.vector_store %arg19[%c0_78, %c0_79], %206 {strides = array<i32>} : memref<8x128xf32, #tpu.memory_space<vmem>>, vector<8x128xf32>,
    } else {
    }
    return
  }
  func.func @transform_0(%arg0: i32, %arg1: i32) -> (i32, i32) {
    %c0_i32 = arith.constant 0 : i32
    %c0_i32_0 = arith.constant 0 : i32
    return %arg0, %c0_i32 : i32, i32
  }
  func.func @transform_1(%arg0: i32, %arg1: i32) -> (i32, i32, i32) {
    %c0_i32 = arith.constant 0 : i32
    %c0_i32_0 = arith.constant 0 : i32
    %c0_i32_1 = arith.constant 0 : i32
    return %arg1, %c0_i32, %c0_i32_0 : i32, i32, i32
  }
  func.func @transform_2(%arg0: i32, %arg1: i32) -> (i32, i32, i32) {
    %c0_i32 = arith.constant 0 : i32
    %c0_i32_0 = arith.constant 0 : i32
    %c0_i32_1 = arith.constant 0 : i32
    return %arg1, %c0_i32, %c0_i32_0 : i32, i32, i32
  }
  func.func @transform_3(%arg0: i32, %arg1: i32) -> (i32, i32, i32) {
    %c0_i32 = arith.constant 0 : i32
    %c0_i32_0 = arith.constant 0 : i32
    %c0_i32_1 = arith.constant 0 : i32
    return %arg1, %c0_i32, %c0_i32_0 : i32, i32, i32
  }
  func.func @transform_4(%arg0: i32, %arg1: i32) -> (i32, i32, i32) {
    %c0_i32 = arith.constant 0 : i32
    %c0_i32_0 = arith.constant 0 : i32
    %c0_i32_1 = arith.constant 0 : i32
    return %arg1, %c0_i32, %c0_i32_0 : i32, i32, i32
  }
  func.func @transform_5(%arg0: i32, %arg1: i32) -> (i32, i32, i32) {
    %c0_i32 = arith.constant 0 : i32
    %c0_i32_0 = arith.constant 0 : i32
    %c0_i32_1 = arith.constant 0 : i32
    return %arg1, %c0_i32, %c0_i32_0 : i32, i32, i32
  }
  func.func @transform_6(%arg0: i32, %arg1: i32) -> (i32, i32, i32) {
    %c0_i32 = arith.constant 0 : i32
    %c0_i32_0 = arith.constant 0 : i32
    %c0_i32_1 = arith.constant 0 : i32
    return %arg1, %c0_i32, %c0_i32_0 : i32, i32, i32
  }
  func.func @transform_7(%arg0: i32, %arg1: i32) -> (i32, i32, i32) {
    %c0_i32 = arith.constant 0 : i32
    %c0_i32_0 = arith.constant 0 : i32
    %c0_i32_1 = arith.constant 0 : i32
    return %arg1, %c0_i32, %c0_i32_0 : i32, i32, i32
  }
  func.func @transform_8(%arg0: i32, %arg1: i32) -> (i32, i32, i32) {
    %c0_i32 = arith.constant 0 : i32
    %c0_i32_0 = arith.constant 0 : i32
    %c0_i32_1 = arith.constant 0 : i32
    return %arg1, %c0_i32, %c0_i32_0 : i32, i32, i32
  }
  func.func @transform_9(%arg0: i32, %arg1: i32) -> (i32, i32, i32) {
    %c0_i32 = arith.constant 0 : i32
    %c0_i32_0 = arith.constant 0 : i32
    %c0_i32_1 = arith.constant 0 : i32
    return %arg1, %c0_i32, %c0_i32_0 : i32, i32, i32
  }
  func.func @transform_10(%arg0: i32, %arg1: i32) -> (i32, i32, i32) {
    %c0_i32 = arith.constant 0 : i32
    %c0_i32_0 = arith.constant 0 : i32
    %c0_i32_1 = arith.constant 0 : i32
    return %arg1, %c0_i32, %c0_i32_0 : i32, i32, i32
  }
  func.func @transform_11(%arg0: i32, %arg1: i32) -> (i32, i32, i32) {
    %c0_i32 = arith.constant 0 : i32
    %c0_i32_0 = arith.constant 0 : i32
    %c0_i32_1 = arith.constant 0 : i32
    return %arg1, %c0_i32, %c0_i32_0 : i32, i32, i32
  }
  func.func @transform_12(%arg0: i32, %arg1: i32) -> (i32, i32, i32) {
    %c0_i32 = arith.constant 0 : i32
    %c0_i32_0 = arith.constant 0 : i32
    %c0_i32_1 = arith.constant 0 : i32
    return %arg1, %c0_i32, %c0_i32_0 : i32, i32, i32
  }
  func.func @transform_13(%arg0: i32, %arg1: i32) -> (i32, i32) {
    %c0_i32 = arith.constant 0 : i32
    %c0_i32_0 = arith.constant 0 : i32
    %c0_i32_1 = arith.constant 0 : i32
    return %c0_i32, %c0_i32_0 : i32, i32
  }
  func.func @transform_14(%arg0: i32, %arg1: i32) -> (i32, i32) {
    %c0_i32 = arith.constant 0 : i32
    %c0_i32_0 = arith.constant 0 : i32
    %c0_i32_1 = arith.constant 0 : i32
    return %c0_i32, %c0_i32_0 : i32, i32
  }
  func.func @transform_15(%arg0: i32, %arg1: i32) -> (i32, i32) {
    %c0_i32 = arith.constant 0 : i32
    %c0_i32_0 = arith.constant 0 : i32
    %c0_i32_1 = arith.constant 0 : i32
    return %c0_i32, %c0_i32_0 : i32, i32
  }
  func.func @transform_16(%arg0: i32, %arg1: i32) -> (i32, i32) {
    %c0_i32 = arith.constant 0 : i32
    %c0_i32_0 = arith.constant 0 : i32
    %c0_i32_1 = arith.constant 0 : i32
    return %c0_i32, %c0_i32_0 : i32, i32
  }
  func.func @transform_17(%arg0: i32, %arg1: i32) -> (i32, i32) {
    %c0_i32 = arith.constant 0 : i32
    %c0_i32_0 = arith.constant 0 : i32
    return %arg0, %c0_i32 : i32, i32
  }
}

</mosaic_0001>

<llo_original>
// kernel: vit_forward.2
$region0: #{vit_forward.2}
  #allocation0 [shape = 'u32[]', space=smem, size = 0x4, offset = 0x4, fixed_abs, tag = 'smem constant byte address 0x4 - core index']
  #allocation1 [shape = 'u32[144,128]{1,0:T(1,128)}', space=vmem, size = 0x12000, scoped, tag = 'internal scratch']
  %s0 = inlined_call_operand.vmem [shape: bf16[48,48], index: 0, kind: input, shape index: {}]
  %s1 = inlined_call_operand.vmem [shape: bf16[48,32], index: 1, kind: input, shape index: {}]
  %s2 = inlined_call_operand.vmem [shape: f32[48,32], index: 2, kind: input, shape index: {}]
  %s3 = inlined_call_operand.vmem [shape: f32[48,32], index: 3, kind: output, shape index: {}]
  %s4 = sld [smem:[#allocation0]]
  $region22: #{vit_forward.2} parent=0
    _
  %s6 = ssub.s32 1, %s4
  %s7 = scalar_select 0, %s6, %s4
  // Predicated region
  $region2: #{vit_forward.2} parent=0 // pred_check
    _
  $region3: #{vit_forward.2} parent=0 // pred_check_branch
    %9 = sbr.rel (0) target = $region5
  $region4: #{vit_forward.2} parent=0 // pred_region
    _
  $region5: #{vit_forward.2} parent=0 // pred_fallthru
    _
  // Predicated region
  $region6: #{vit_forward.2} parent=0 // pred_check
    _
  $region7: #{vit_forward.2} parent=0 // pred_check_branch
    %11 = sbr.rel (0) target = $region9
  $region8: #{vit_forward.2} parent=0 // pred_region
    _
  $region9: #{vit_forward.2} parent=0 // pred_fallthru
    _
  // Predicated region
  $region10: #{vit_forward.2} parent=0 // pred_check
    _
  $region11: #{vit_forward.2} parent=0 // pred_check_branch
    %13 = sbr.rel (0) target = $region13
  $region12: #{vit_forward.2} parent=0 // pred_region
    _
  $region13: #{vit_forward.2} parent=0 // pred_fallthru
    _
  %v15 = vld [vmem:[%s0] sm:$0xf]
  %v16 = vld [vmem:[%s0 + $0x4] sm:$0xf]
  %v17 = vld [vmem:[%s0 + $0x8] sm:$0xf]
  %v18 = vld [vmem:[%s0 + $0xc] sm:$0xf]
  %v19 = vld [vmem:[%s0 + $0x10] sm:$0xf]
  %v20 = vld [vmem:[%s0 + $0x14] sm:$0xf]
  %v21 = vld [vmem:[%s1] sm:$0xf]
  %v22 = vld [vmem:[%s1 + $0x4] sm:$0xf]
  %v23 = vld [vmem:[%s1 + $0x8] sm:$0xf]
  %v24 = vld [vmem:[%s1 + $0xc] sm:$0xf]
  %v25 = vld [vmem:[%s1 + $0x10] sm:$0xf]
  %v26 = vld [vmem:[%s1 + $0x14] sm:$0xf]
  %v27 = vld [vmem:[%s2] sm:$0xff]
  %v28 = vld [vmem:[%s2 + $0x8] sm:$0xff]
  %v29 = vld [vmem:[%s2 + $0x10] sm:$0xff]
  %v30 = vld [vmem:[%s2 + $0x18] sm:$0xff]
  %v31 = vld [vmem:[%s2 + $0x20] sm:$0xff]
  %v32 = vld [vmem:[%s2 + $0x28] sm:$0xff]
  %v39 = vunpack.c.l.b16 %v15
  %v40 = vunpack.c.l.b16 %v16
  %v41 = vunpack.c.l.b16 %v17
  %v42 = vunpack.c.l.b16 %v18
  %v43 = vunpack.c.l.b16 %v19
  %v44 = vunpack.c.l.b16 %v20
  %v45 = vpack.c.b16 %v40, %v39
  %v46 = vpack.c.b16 %v42, %v41
  %v47 = vpack.c.b16 %v44, %v43
  %v54 = vunpack.c.l.b16 %v21
  %v55 = vunpack.c.l.b16 %v22
  %v56 = vunpack.c.l.b16 %v23
  %v57 = vunpack.c.l.b16 %v24
  %v58 = vunpack.c.l.b16 %v25
  %v59 = vunpack.c.l.b16 %v26
  %v60 = vpack.c.b16 %v55, %v54
  %v61 = vpack.c.b16 %v57, %v56
  %v62 = vpack.c.b16 %v59, %v58
  %vm66 = vcmask 392192
  %v68 = vsel %vm66, %v45, 0
  %v71 = vsel %vm66, %v46, 0
  %v74 = vsel %vm66, %v47, 0
  %76 = vmatprep.subr.bf16.mxu0 0
  %77 = vmatpush1.bf16.msra.mxu0 0
  %78 = vmatprep.subr.bf16.mxu0 0
  %79 = vmatpush1.bf16.msra.mxu0 0
  %80 = vmatprep.subr.bf16.mxu0 0
  %81 = vmatpush1.bf16.msra.mxu0 0
  %82 = vmatprep.subr.bf16.mxu0 0
  %83 = vmatpush1.bf16.msra.mxu0 0
  %84 = vmatprep.subr.bf16.mxu0 0
  %85 = vmatpush1.bf16.msra.mxu0 0
  %86 = vmatprep.subr.bf16.mxu0 0
  %87 = vmatpush1.bf16.msra.mxu0 %v62
  %88 = vmatprep.subr.bf16.mxu0 0
  %89 = vmatpush1.bf16.msra.mxu0 %v61
  %90 = vmatprep.subr.bf16.mxu0 0
  %91 = vmatpush1.bf16.msra.mxu0 %v60
  %92 = vmatprep.subr.bf16.mxu0 0
  %93 = vmatpush2.bf16.msra.mxu0 0
  %94 = vmatprep.subr.bf16.mxu0 0
  %95 = vmatpush2.bf16.msra.mxu0 0
  %96 = vmatprep.subr.bf16.mxu0 0
  %97 = vmatpush2.bf16.msra.mxu0 0
  %98 = vmatprep.subr.bf16.mxu0 0
  %99 = vmatpush2.bf16.msra.mxu0 0
  %100 = vmatprep.subr.bf16.mxu0 0
  %101 = vmatpush2.bf16.msra.mxu0 0
  %102 = vmatprep.subr.bf16.mxu0 0
  %103 = vmatpush2.bf16.msra.mxu0 0
  %104 = vmatprep.subr.bf16.mxu0 0
  %105 = vmatpush2.bf16.msra.mxu0 0
  %106 = vmatprep.subr.bf16.mxu0 0
  %107 = vmatpush2.bf16.msra.mxu0 0
  %108 = vmatprep.mubr.bf16.mxu0 0
  %109 = vmatmul.mubr.bf16.gmra.mxu0 %v68
  %v110 = vpop.f32.mrf.mxu0
  %v111 = vadd.f32 %v27, %v110
  %v112 = vpop.f32.mrf.mxu0
  %v113 = vpop.f32.mrf.mxu0
  %v114 = vadd.f32 %v28, %v113
  %v115 = vpop.f32.mrf.mxu0
  %116 = vmatprep.mubr.bf16.mxu0 0
  %117 = vmatmul.mubr.bf16.gmra.mxu0 %v71
  %v118 = vpop.f32.mrf.mxu0
  %v119 = vadd.f32 %v29, %v118
  %v120 = vpop.f32.mrf.mxu0
  %v121 = vpop.f32.mrf.mxu0
  %v122 = vadd.f32 %v30, %v121
  %v123 = vpop.f32.mrf.mxu0
  %124 = vmatprep.mubr.bf16.mxu0 0
  %125 = vmatmul.mubr.bf16.gmra.mxu0 %v74
  %v126 = vpop.f32.mrf.mxu0
  %v127 = vadd.f32 %v31, %v126
  %v128 = vpop.f32.mrf.mxu0
  %v129 = vpop.f32.mrf.mxu0
  %v130 = vadd.f32 %v32, %v129
  %v131 = vpop.f32.mrf.mxu0
  %132 = vdwg.mxu0
  %vm133 = vcmask 261120
  %134 = vst.msk [vmem:[%s3] sm:$0xff] %vm133, %v111
  %135 = vst.msk [vmem:[%s3 + $0x8] sm:$0xff] %vm133, %v114
  %136 = vst.msk [vmem:[%s3 + $0x10] sm:$0xff] %vm133, %v119
  %137 = vst.msk [vmem:[%s3 + $0x18] sm:$0xff] %vm133, %v122
  %138 = vst.msk [vmem:[%s3 + $0x20] sm:$0xff] %vm133, %v127
  %139 = vst.msk [vmem:[%s3 + $0x28] sm:$0xff] %vm133, %v130
  // Predicated region
  $region14: #{vit_forward.2} parent=0 // pred_check
    _
  $region15: #{vit_forward.2} parent=0 // pred_check_branch
    %141 = sbr.rel (0) target = $region17
  $region16: #{vit_forward.2} parent=0 // pred_region
    _
  $region17: #{vit_forward.2} parent=0 // pred_fallthru
    _
  // Predicated region
  $region18: #{vit_forward.2} parent=0 // pred_check
    _
  $region19: #{vit_forward.2} parent=0 // pred_check_branch
    %143 = sbr.rel (0) target = $region21
  $region20: #{vit_forward.2} parent=0 // pred_region
    _
  $region21: #{vit_forward.2} parent=0 // pred_fallthru
    _

// kernel: vit_forward.3
$region0: #{vit_forward.3}
  #allocation0 [shape = 'u32[]', space=smem, size = 0x4, offset = 0x4, fixed_abs, tag = 'smem constant byte address 0x4 - core index']
  #allocation1 [shape = 'u32[144,128]{1,0:T(1,128)}', space=vmem, size = 0x12000, scoped, tag = 'internal scratch']
  #allocation2 [shape = 'f32[24,32]{1,0:T(8,128)}', space=vmem, size = 0x3000, scoped, tag = 'scratch operand']
  %s0 = inlined_call_operand.vmem [shape: f32[48,32], index: 0, kind: input, shape index: {}]
  %s1 = inlined_call_operand.vmem [shape: f32[2,1,32], index: 1, kind: input, shape index: {}]
  %s2 = inlined_call_operand.vmem [shape: f32[2,1,32], index: 2, kind: input, shape index: {}]
  %s3 = inlined_call_operand.vmem [shape: bf16[2,32,96], index: 3, kind: input, shape index: {}]
  %s4 = inlined_call_operand.vmem [shape: f32[2,1,96], index: 4, kind: input, shape index: {}]
  %s5 = inlined_call_operand.vmem [shape: bf16[2,32,32], index: 5, kind: input, shape index: {}]
  %s6 = inlined_call_operand.vmem [shape: f32[2,1,32], index: 6, kind: input, shape index: {}]
  %s7 = inlined_call_operand.vmem [shape: f32[2,1,32], index: 7, kind: input, shape index: {}]
  %s8 = inlined_call_operand.vmem [shape: f32[2,1,32], index: 8, kind: input, shape index: {}]
  %s9 = inlined_call_operand.vmem [shape: bf16[2,32,64], index: 9, kind: input, shape index: {}]
  %s10 = inlined_call_operand.vmem [shape: f32[2,1,64], index: 10, kind: input, shape index: {}]
  %s11 = inlined_call_operand.vmem [shape: bf16[2,64,32], index: 11, kind: input, shape index: {}]
  %s12 = inlined_call_operand.vmem [shape: f32[2,1,32], index: 12, kind: input, shape index: {}]
  %s13 = inlined_call_operand.vmem [shape: f32[1,32], index: 13, kind: input, shape index: {}]
  %s14 = inlined_call_operand.vmem [shape: f32[1,32], index: 14, kind: input, shape index: {}]
  %s15 = inlined_call_operand.vmem [shape: bf16[32,128], index: 15, kind: input, shape index: {}]
  %s16 = inlined_call_operand.vmem [shape: f32[1,128], index: 16, kind: input, shape index: {}]
  %s17 = inlined_call_operand.vmem [shape: f32[16,128], index: 17, kind: output, shape index: {}]
  %s18 = sld [smem:[#allocation0]]
  $region109: #{vit_forward.3} parent=0
    _
  %s20 = ssub.s32 1, %s18
  %s21 = scalar_select 0, %s20, %s18
  loop: start=0, step=1, limit=6
  $region2: #{vit_forward.3} parent=0 // loop_pre_header
    _
  $region3: #{vit_forward.3} parent=0 // loop_header
    %s23 = sphi 0, %s27
    %p24 = scmp.ge.s32.totalorder %s23, 6
    %s30 = sphi 0, %s42
    %s31 = sphi 0, %s38
    %s32 = sphi 0, %s30
    %s33 = sphi 0, %s31
    %s34 = sphi 0, %s32
    %s35 = sphi 0, %s33
    %s45 = sphi 0, %s47
    %s48 = sphi 0, %s45
    %s49 = sphi 0, %s48
    %s65 = sphi 0, %s49
    %s71 = sphi 0, %s73
    %s74 = sphi 0, %s71
    %s75 = sphi 0, %s74
    %s91 = sphi 0, %s75
    %s97 = sphi 0, %s99
    %s100 = sphi 0, %s97
    %s101 = sphi 0, %s100
    %s117 = sphi 0, %s101
    %s123 = sphi 0, %s125
    %s126 = sphi 0, %s123
    %s127 = sphi 0, %s126
    %s143 = sphi 0, %s127
    %s149 = sphi 0, %s151
    %s152 = sphi 0, %s149
    %s153 = sphi 0, %s152
    %s169 = sphi 0, %s153
    %s175 = sphi 0, %s177
    %s178 = sphi 0, %s175
    %s179 = sphi 0, %s178
    %s195 = sphi 0, %s179
    %s201 = sphi 0, %s203
    %s204 = sphi 0, %s201
    %s205 = sphi 0, %s204
    %s221 = sphi 0, %s205
    %s227 = sphi 0, %s229
    %s230 = sphi 0, %s227
    %s231 = sphi 0, %s230
    %s247 = sphi 0, %s231
    %s253 = sphi 0, %s255
    %s256 = sphi 0, %s253
    %s257 = sphi 0, %s256
    %s273 = sphi 0, %s257
    %s279 = sphi 0, %s281
    %s282 = sphi 0, %s279
    %s283 = sphi 0, %s282
    %s299 = sphi 0, %s283
    %s305 = sphi 0, %s307
    %s308 = sphi 0, %s305
    %s309 = sphi 0, %s308
    %s325 = sphi 0, %s309
    %s331 = sphi 0, %s333
    %s334 = sphi 0, %s331
    %s335 = sphi 0, %s334
    %s351 = sphi 0, %s335
    %s357 = sphi 0, %s359
    %s360 = sphi 0, %s357
    %s361 = sphi 0, %s360
    %s377 = sphi 0, %s361
    %s381 = sphi 0, %s381
    %s383 = sphi 0, %s381
    %s384 = sphi 0, %s383
    %s398 = sphi 0, %s384
    %s402 = sphi 0, %s402
    %s404 = sphi 0, %s402
    %s405 = sphi 0, %s404
    %s419 = sphi 0, %s405
    %s423 = sphi 0, %s423
    %s425 = sphi 0, %s423
    %s426 = sphi 0, %s425
    %s440 = sphi 0, %s426
    %s444 = sphi 0, %s444
    %s446 = sphi 0, %s444
    %s447 = sphi 0, %s446
    %s461 = sphi 0, %s447
    %s467 = sphi 0, %s469
    %s470 = sphi 0, %s467
    %s471 = sphi 0, %s470
    %s487 = sphi 0, %s471
  $region4: #{vit_forward.3} parent=0 // loop_header_branch
    %26 = sbr.rel (%p24) target = $region8
  $region5: #{vit_forward.3} parent=0 // loop_body
    %s28 = ssub.s32 %s23, 1
    %s29 = ssub.s32 %s23, 2
    %s36 = sadd.s32 1, %s31
    %p37 = scmp.ge.s32.totalorder %s36, 2
    %s38 = scalar_select %p37, 0, %s36
    %s39 = sadd.s32 1, %s30
    %s40 = scalar_select %p37, %s39, %s30
    %p41 = scmp.ge.s32.totalorder %s40, 2
    %s42 = scalar_select %p41, 0, %s40
    %s43 = ssub.s32 %s30, %s42
    %p44 = scmp.eq.s32.totalorder %s43, 0
    %s46 = sadd.s32 %s45, 1
    %s47 = scalar_select %p44, %s45, %s46
    %p50 = pneg %p44
    %p51 = scmp.eq.s32.totalorder %s23, 3
    %p52 = por %p50, %p51
    %p53 = scmp.ne.s32.totalorder %s45, %s48
    %p54 = scmp.eq.s32.totalorder %s23, 0
    %p55 = por %p53, %p54
    %p56 = scmp.ne.s32.totalorder %s45, %s48
    %p57 = scmp.eq.s32.totalorder %s28, 3
    %p58 = por %p56, %p57
    %p59 = scmp.ne.s32.totalorder %s48, %s49
    %p60 = scmp.eq.s32.totalorder %s28, 0
    %p61 = por %p59, %p60
    %p62 = scmp.ne.s32.totalorder %s48, %s49
    %p63 = scmp.eq.s32.totalorder %s29, 3
    %p64 = por %p62, %p63
    %p66 = scmp.ne.s32.totalorder %s49, %s65
    %p67 = scmp.eq.s32.totalorder %s29, 0
    %p68 = por %p66, %p67
    %s69 = ssub.s32 %s31, %s38
    %p70 = scmp.eq.s32.totalorder %s69, 0
    %s72 = sadd.s32 %s71, 1
    %s73 = scalar_select %p70, %s71, %s72
    %p76 = pneg %p70
    %p77 = scmp.eq.s32.totalorder %s23, 3
    %p78 = por %p76, %p77
    %p79 = scmp.ne.s32.totalorder %s71, %s74
    %p80 = scmp.eq.s32.totalorder %s23, 0
    %p81 = por %p79, %p80
    %p82 = scmp.ne.s32.totalorder %s71, %s74
    %p83 = scmp.eq.s32.totalorder %s28, 3
    %p84 = por %p82, %p83
    %p85 = scmp.ne.s32.totalorder %s74, %s75
    %p86 = scmp.eq.s32.totalorder %s28, 0
    %p87 = por %p85, %p86
    %p88 = scmp.ne.s32.totalorder %s74, %s75
    %p89 = scmp.eq.s32.totalorder %s29, 3
    %p90 = por %p88, %p89
    %p92 = scmp.ne.s32.totalorder %s75, %s91
    %p93 = scmp.eq.s32.totalorder %s29, 0
    %p94 = por %p92, %p93
    %s95 = ssub.s32 %s31, %s38
    %p96 = scmp.eq.s32.totalorder %s95, 0
    %s98 = sadd.s32 %s97, 1
    %s99 = scalar_select %p96, %s97, %s98
    %p102 = pneg %p96
    %p103 = scmp.eq.s32.totalorder %s23, 3
    %p104 = por %p102, %p103
    %p105 = scmp.ne.s32.totalorder %s97, %s100
    %p106 = scmp.eq.s32.totalorder %s23, 0
    %p107 = por %p105, %p106
    %p108 = scmp.ne.s32.totalorder %s97, %s100
    %p109 = scmp.eq.s32.totalorder %s28, 3
    %p110 = por %p108, %p109
    %p111 = scmp.ne.s32.totalorder %s100, %s101
    %p112 = scmp.eq.s32.totalorder %s28, 0
    %p113 = por %p111, %p112
    %p114 = scmp.ne.s32.totalorder %s100, %s101
    %p115 = scmp.eq.s32.totalorder %s29, 3
    %p116 = por %p114, %p115
    %p118 = scmp.ne.s32.totalorder %s101, %s117
    %p119 = scmp.eq.s32.totalorder %s29, 0
    %p120 = por %p118, %p119
    %s121 = ssub.s32 %s31, %s38
    %p122 = scmp.eq.s32.totalorder %s121, 0
    %s124 = sadd.s32 %s123, 1
    %s125 = scalar_select %p122, %s123, %s124
    %p128 = pneg %p122
    %p129 = scmp.eq.s32.totalorder %s23, 3
    %p130 = por %p128, %p129
    %p131 = scmp.ne.s32.totalorder %s123, %s126
    %p132 = scmp.eq.s32.totalorder %s23, 0
    %p133 = por %p131, %p132
    %p134 = scmp.ne.s32.totalorder %s123, %s126
    %p135 = scmp.eq.s32.totalorder %s28, 3
    %p136 = por %p134, %p135
    %p137 = scmp.ne.s32.totalorder %s126, %s127
    %p138 = scmp.eq.s32.totalorder %s28, 0
    %p139 = por %p137, %p138
    %p140 = scmp.ne.s32.totalorder %s126, %s127
    %p141 = scmp.eq.s32.totalorder %s29, 3
    %p142 = por %p140, %p141
    %p144 = scmp.ne.s32.totalorder %s127, %s143
    %p145 = scmp.eq.s32.totalorder %s29, 0
    %p146 = por %p144, %p145
    %s147 = ssub.s32 %s31, %s38
    %p148 = scmp.eq.s32.totalorder %s147, 0
    %s150 = sadd.s32 %s149, 1
    %s151 = scalar_select %p148, %s149, %s150
    %p154 = pneg %p148
    %p155 = scmp.eq.s32.totalorder %s23, 3
    %p156 = por %p154, %p155
    %p157 = scmp.ne.s32.totalorder %s149, %s152
    %p158 = scmp.eq.s32.totalorder %s23, 0
    %p159 = por %p157, %p158
    %p160 = scmp.ne.s32.totalorder %s149, %s152
    %p161 = scmp.eq.s32.totalorder %s28, 3
    %p162 = por %p160, %p161
    %p163 = scmp.ne.s32.totalorder %s152, %s153
    %p164 = scmp.eq.s32.totalorder %s28, 0
    %p165 = por %p163, %p164
    %p166 = scmp.ne.s32.totalorder %s152, %s153
    %p167 = scmp.eq.s32.totalorder %s29, 3
    %p168 = por %p166, %p167
    %p170 = scmp.ne.s32.totalorder %s153, %s169
    %p171 = scmp.eq.s32.totalorder %s29, 0
    %p172 = por %p170, %p171
    %s173 = ssub.s32 %s31, %s38
    %p174 = scmp.eq.s32.totalorder %s173, 0
    %s176 = sadd.s32 %s175, 1
    %s177 = scalar_select %p174, %s175, %s176
    %p180 = pneg %p174
    %p181 = scmp.eq.s32.totalorder %s23, 3
    %p182 = por %p180, %p181
    %p183 = scmp.ne.s32.totalorder %s175, %s178
    %p184 = scmp.eq.s32.totalorder %s23, 0
    %p185 = por %p183, %p184
    %p186 = scmp.ne.s32.totalorder %s175, %s178
    %p187 = scmp.eq.s32.totalorder %s28, 3
    %p188 = por %p186, %p187
    %p189 = scmp.ne.s32.totalorder %s178, %s179
    %p190 = scmp.eq.s32.totalorder %s28, 0
    %p191 = por %p189, %p190
    %p192 = scmp.ne.s32.totalorder %s178, %s179
    %p193 = scmp.eq.s32.totalorder %s29, 3
    %p194 = por %p192, %p193
    %p196 = scmp.ne.s32.totalorder %s179, %s195
    %p197 = scmp.eq.s32.totalorder %s29, 0
    %p198 = por %p196, %p197
    %s199 = ssub.s32 %s31, %s38
    %p200 = scmp.eq.s32.totalorder %s199, 0
    %s202 = sadd.s32 %s201, 1
    %s203 = scalar_select %p200, %s201, %s202
    %p206 = pneg %p200
    %p207 = scmp.eq.s32.totalorder %s23, 3
    %p208 = por %p206, %p207
    %p209 = scmp.ne.s32.totalorder %s201, %s204
    %p210 = scmp.eq.s32.totalorder %s23, 0
    %p211 = por %p209, %p210
    %p212 = scmp.ne.s32.totalorder %s201, %s204
    %p213 = scmp.eq.s32.totalorder %s28, 3
    %p214 = por %p212, %p213
    %p215 = scmp.ne.s32.totalorder %s204, %s205
    %p216 = scmp.eq.s32.totalorder %s28, 0
    %p217 = por %p215, %p216
    %p218 = scmp.ne.s32.totalorder %s204, %s205
    %p219 = scmp.eq.s32.totalorder %s29, 3
    %p220 = por %p218, %p219
    %p222 = scmp.ne.s32.totalorder %s205, %s221
    %p223 = scmp.eq.s32.totalorder %s29, 0
    %p224 = por %p222, %p223
    %s225 = ssub.s32 %s31, %s38
    %p226 = scmp.eq.s32.totalorder %s225, 0
    %s228 = sadd.s32 %s227, 1
    %s229 = scalar_select %p226, %s227, %s228
    %p232 = pneg %p226
    %p233 = scmp.eq.s32.totalorder %s23, 3
    %p234 = por %p232, %p233
    %p235 = scmp.ne.s32.totalorder %s227, %s230
    %p236 = scmp.eq.s32.totalorder %s23, 0
    %p237 = por %p235, %p236
    %p238 = scmp.ne.s32.totalorder %s227, %s230
    %p239 = scmp.eq.s32.totalorder %s28, 3
    %p240 = por %p238, %p239
    %p241 = scmp.ne.s32.totalorder %s230, %s231
    %p242 = scmp.eq.s32.totalorder %s28, 0
    %p243 = por %p241, %p242
    %p244 = scmp.ne.s32.totalorder %s230, %s231
    %p245 = scmp.eq.s32.totalorder %s29, 3
    %p246 = por %p244, %p245
    %p248 = scmp.ne.s32.totalorder %s231, %s247
    %p249 = scmp.eq.s32.totalorder %s29, 0
    %p250 = por %p248, %p249
    %s251 = ssub.s32 %s31, %s38
    %p252 = scmp.eq.s32.totalorder %s251, 0
    %s254 = sadd.s32 %s253, 1
    %s255 = scalar_select %p252, %s253, %s254
    %p258 = pneg %p252
    %p259 = scmp.eq.s32.totalorder %s23, 3
    %p260 = por %p258, %p259
    %p261 = scmp.ne.s32.totalorder %s253, %s256
    %p262 = scmp.eq.s32.totalorder %s23, 0
    %p263 = por %p261, %p262
    %p264 = scmp.ne.s32.totalorder %s253, %s256
    %p265 = scmp.eq.s32.totalorder %s28, 3
    %p266 = por %p264, %p265
    %p267 = scmp.ne.s32.totalorder %s256, %s257
    %p268 = scmp.eq.s32.totalorder %s28, 0
    %p269 = por %p267, %p268
    %p270 = scmp.ne.s32.totalorder %s256, %s257
    %p271 = scmp.eq.s32.totalorder %s29, 3
    %p272 = por %p270, %p271
    %p274 = scmp.ne.s32.totalorder %s257, %s273
    %p275 = scmp.eq.s32.totalorder %s29, 0
    %p276 = por %p274, %p275
    %s277 = ssub.s32 %s31, %s38
    %p278 = scmp.eq.s32.totalorder %s277, 0
    %s280 = sadd.s32 %s279, 1
    %s281 = scalar_select %p278, %s279, %s280
    %p284 = pneg %p278
    %p285 = scmp.eq.s32.totalorder %s23, 3
    %p286 = por %p284, %p285
    %p287 = scmp.ne.s32.totalorder %s279, %s282
    %p288 = scmp.eq.s32.totalorder %s23, 0
    %p289 = por %p287, %p288
    %p290 = scmp.ne.s32.totalorder %s279, %s282
    %p291 = scmp.eq.s32.totalorder %s28, 3
    %p292 = por %p290, %p291
    %p293 = scmp.ne.s32.totalorder %s282, %s283
    %p294 = scmp.eq.s32.totalorder %s28, 0
    %p295 = por %p293, %p294
    %p296 = scmp.ne.s32.totalorder %s282, %s283
    %p297 = scmp.eq.s32.totalorder %s29, 3
    %p298 = por %p296, %p297
    %p300 = scmp.ne.s32.totalorder %s283, %s299
    %p301 = scmp.eq.s32.totalorder %s29, 0
    %p302 = por %p300, %p301
    %s303 = ssub.s32 %s31, %s38
    %p304 = scmp.eq.s32.totalorder %s303, 0
    %s306 = sadd.s32 %s305, 1
    %s307 = scalar_select %p304, %s305, %s306
    %p310 = pneg %p304
    %p311 = scmp.eq.s32.totalorder %s23, 3
    %p312 = por %p310, %p311
    %p313 = scmp.ne.s32.totalorder %s305, %s308
    %p314 = scmp.eq.s32.totalorder %s23, 0
    %p315 = por %p313, %p314
    %p316 = scmp.ne.s32.totalorder %s305, %s308
    %p317 = scmp.eq.s32.totalorder %s28, 3
    %p318 = por %p316, %p317
    %p319 = scmp.ne.s32.totalorder %s308, %s309
    %p320 = scmp.eq.s32.totalorder %s28, 0
    %p321 = por %p319, %p320
    %p322 = scmp.ne.s32.totalorder %s308, %s309
    %p323 = scmp.eq.s32.totalorder %s29, 3
    %p324 = por %p322, %p323
    %p326 = scmp.ne.s32.totalorder %s309, %s325
    %p327 = scmp.eq.s32.totalorder %s29, 0
    %p328 = por %p326, %p327
    %s329 = ssub.s32 %s31, %s38
    %p330 = scmp.eq.s32.totalorder %s329, 0
    %s332 = sadd.s32 %s331, 1
    %s333 = scalar_select %p330, %s331, %s332
    %p336 = pneg %p330
    %p337 = scmp.eq.s32.totalorder %s23, 3
    %p338 = por %p336, %p337
    %p339 = scmp.ne.s32.totalorder %s331, %s334
    %p340 = scmp.eq.s32.totalorder %s23, 0
    %p341 = por %p339, %p340
    %p342 = scmp.ne.s32.totalorder %s331, %s334
    %p343 = scmp.eq.s32.totalorder %s28, 3
    %p344 = por %p342, %p343
    %p345 = scmp.ne.s32.totalorder %s334, %s335
    %p346 = scmp.eq.s32.totalorder %s28, 0
    %p347 = por %p345, %p346
    %p348 = scmp.ne.s32.totalorder %s334, %s335
    %p349 = scmp.eq.s32.totalorder %s29, 3
    %p350 = por %p348, %p349
    %p352 = scmp.ne.s32.totalorder %s335, %s351
    %p353 = scmp.eq.s32.totalorder %s29, 0
    %p354 = por %p352, %p353
    %s355 = ssub.s32 %s31, %s38
    %p356 = scmp.eq.s32.totalorder %s355, 0
    %s358 = sadd.s32 %s357, 1
    %s359 = scalar_select %p356, %s357, %s358
    %p362 = pneg %p356
    %p363 = scmp.eq.s32.totalorder %s23, 3
    %p364 = por %p362, %p363
    %p365 = scmp.ne.s32.totalorder %s357, %s360
    %p366 = scmp.eq.s32.totalorder %s23, 0
    %p367 = por %p365, %p366
    %p368 = scmp.ne.s32.totalorder %s357, %s360
    %p369 = scmp.eq.s32.totalorder %s28, 3
    %p370 = por %p368, %p369
    %p371 = scmp.ne.s32.totalorder %s360, %s361
    %p372 = scmp.eq.s32.totalorder %s28, 0
    %p373 = por %p371, %p372
    %p374 = scmp.ne.s32.totalorder %s360, %s361
    %p375 = scmp.eq.s32.totalorder %s29, 3
    %p376 = por %p374, %p375
    %p378 = scmp.ne.s32.totalorder %s361, %s377
    %p379 = scmp.eq.s32.totalorder %s29, 0
    %p380 = por %p378, %p379
    %s382 = sadd.s32 %s381, 1
    %p385 = scmp.eq.s32.totalorder %s23, 3
    %p386 = scmp.ne.s32.totalorder %s381, %s383
    %p387 = scmp.eq.s32.totalorder %s23, 0
    %p388 = por %p386, %p387
    %p389 = scmp.ne.s32.totalorder %s381, %s383
    %p390 = scmp.eq.s32.totalorder %s28, 3
    %p391 = por %p389, %p390
    %p392 = scmp.ne.s32.totalorder %s383, %s384
    %p393 = scmp.eq.s32.totalorder %s28, 0
    %p394 = por %p392, %p393
    %p395 = scmp.ne.s32.totalorder %s383, %s384
    %p396 = scmp.eq.s32.totalorder %s29, 3
    %p397 = por %p395, %p396
    %p399 = scmp.ne.s32.totalorder %s384, %s398
    %p400 = scmp.eq.s32.totalorder %s29, 0
    %p401 = por %p399, %p400
    %s403 = sadd.s32 %s402, 1
    %p406 = scmp.eq.s32.totalorder %s23, 3
    %p407 = scmp.ne.s32.totalorder %s402, %s404
    %p408 = scmp.eq.s32.totalorder %s23, 0
    %p409 = por %p407, %p408
    %p410 = scmp.ne.s32.totalorder %s402, %s404
    %p411 = scmp.eq.s32.totalorder %s28, 3
    %p412 = por %p410, %p411
    %p413 = scmp.ne.s32.totalorder %s404, %s405
    %p414 = scmp.eq.s32.totalorder %s28, 0
    %p415 = por %p413, %p414
    %p416 = scmp.ne.s32.totalorder %s404, %s405
    %p417 = scmp.eq.s32.totalorder %s29, 3
    %p418 = por %p416, %p417
    %p420 = scmp.ne.s32.totalorder %s405, %s419
    %p421 = scmp.eq.s32.totalorder %s29, 0
    %p422 = por %p420, %p421
    %s424 = sadd.s32 %s423, 1
    %p427 = scmp.eq.s32.totalorder %s23, 3
    %p428 = scmp.ne.s32.totalorder %s423, %s425
    %p429 = scmp.eq.s32.totalorder %s23, 0
    %p430 = por %p428, %p429
    %p431 = scmp.ne.s32.totalorder %s423, %s425
    %p432 = scmp.eq.s32.totalorder %s28, 3
    %p433 = por %p431, %p432
    %p434 = scmp.ne.s32.totalorder %s425, %s426
    %p435 = scmp.eq.s32.totalorder %s28, 0
    %p436 = por %p434, %p435
    %p437 = scmp.ne.s32.totalorder %s425, %s426
    %p438 = scmp.eq.s32.totalorder %s29, 3
    %p439 = por %p437, %p438
    %p441 = scmp.ne.s32.totalorder %s426, %s440
    %p442 = scmp.eq.s32.totalorder %s29, 0
    %p443 = por %p441, %p442
    %s445 = sadd.s32 %s444, 1
    %p448 = scmp.eq.s32.totalorder %s23, 3
    %p449 = scmp.ne.s32.totalorder %s444, %s446
    %p450 = scmp.eq.s32.totalorder %s23, 0
    %p451 = por %p449, %p450
    %p452 = scmp.ne.s32.totalorder %s444, %s446
    %p453 = scmp.eq.s32.totalorder %s28, 3
    %p454 = por %p452, %p453
    %p455 = scmp.ne.s32.totalorder %s446, %s447
    %p456 = scmp.eq.s32.totalorder %s28, 0
    %p457 = por %p455, %p456
    %p458 = scmp.ne.s32.totalorder %s446, %s447
    %p459 = scmp.eq.s32.totalorder %s29, 3
    %p460 = por %p458, %p459
    %p462 = scmp.ne.s32.totalorder %s447, %s461
    %p463 = scmp.eq.s32.totalorder %s29, 0
    %p464 = por %p462, %p463
    %s465 = ssub.s32 %s30, %s42
    %p466 = scmp.eq.s32.totalorder %s465, 0
    %s468 = sadd.s32 %s467, 1
    %s469 = scalar_select %p466, %s467, %s468
    %p472 = pneg %p466
    %p473 = scmp.eq.s32.totalorder %s23, 3
    %p474 = por %p472, %p473
    %p475 = scmp.ne.s32.totalorder %s467, %s470
    %p476 = scmp.eq.s32.totalorder %s23, 0
    %p477 = por %p475, %p476
    %p478 = scmp.ne.s32.totalorder %s467, %s470
    %p479 = scmp.eq.s32.totalorder %s28, 3
    %p480 = por %p478, %p479
    %p481 = scmp.ne.s32.totalorder %s470, %s471
    %p482 = scmp.eq.s32.totalorder %s28, 0
    %p483 = por %p481, %p482
    %p484 = scmp.ne.s32.totalorder %s470, %s471
    %p485 = scmp.eq.s32.totalorder %s29, 3
    %p486 = por %p484, %p485
    %p488 = scmp.ne.s32.totalorder %s471, %s487
    %p489 = scmp.eq.s32.totalorder %s29, 0
    %p490 = por %p488, %p489
    %p491 = scmp.le.s32.totalorder 1, %s23
    %p492 = scmp.lt.s32.totalorder %s23, 5
    %p493 = pnand %p491, %p492
    %p494 = pneg %p493
    // Predicated region
    $region9: #{vit_forward.3} parent=5 // pred_check
      _
    $region10: #{vit_forward.3} parent=5 // pred_check_branch
      %496 = sbr.rel (%p493) target = $region12
    $region11: #{vit_forward.3} parent=5 // pred_region
      %s497 = ssub.s32 %s23, 1
      // Predicated region
      $region13: #{vit_forward.3} parent=11 // pred_check
        %p498 = pneg %p394
      $region14: #{vit_forward.3} parent=11 // pred_check_branch
        %500 = sbr.rel (%p498) target = $region16
      $region15: #{vit_forward.3} parent=11 // pred_region
        _
      $region16: #{vit_forward.3} parent=11 // pred_fallthru
        _
      // Predicated region
      $region17: #{vit_forward.3} parent=11 // pred_check
        %p501 = pneg %p415
      $region18: #{vit_forward.3} parent=11 // pred_check_branch
        %503 = sbr.rel (%p501) target = $region20
      $region19: #{vit_forward.3} parent=11 // pred_region
        _
      $region20: #{vit_forward.3} parent=11 // pred_fallthru
        _
      // Predicated region
      $region21: #{vit_forward.3} parent=11 // pred_check
        %p504 = pneg %p436
      $region22: #{vit_forward.3} parent=11 // pred_check_branch
        %506 = sbr.rel (%p504) target = $region24
      $region23: #{vit_forward.3} parent=11 // pred_region
        _
      $region24: #{vit_forward.3} parent=11 // pred_fallthru
        _
      // Predicated region
      $region25: #{vit_forward.3} parent=11 // pred_check
        %p507 = pneg %p457
      $region26: #{vit_forward.3} parent=11 // pred_check_branch
        %509 = sbr.rel (%p507) target = $region28
      $region27: #{vit_forward.3} parent=11 // pred_region
        _
      $region28: #{vit_forward.3} parent=11 // pred_fallthru
        _
    $region12: #{vit_forward.3} parent=5 // pred_fallthru
      _
    %p510 = scmp.lt.s32.totalorder %s23, 4
    // Predicated region
    $region29: #{vit_forward.3} parent=5 // pred_check
      %p511 = pneg %p510
    $region30: #{vit_forward.3} parent=5 // pred_check_branch
      %513 = sbr.rel (%p511) target = $region32
    $region31: #{vit_forward.3} parent=5 // pred_region
      // Predicated region
      $region33: #{vit_forward.3} parent=31 // pred_check
        %p514 = pneg %p55
      $region34: #{vit_forward.3} parent=31 // pred_check_branch
        %516 = sbr.rel (%p514) target = $region36
      $region35: #{vit_forward.3} parent=31 // pred_region
        %s517 = smul.u32 3, %s30
        %p518 = scmp.lt.s32.totalorder %s517, 5
        %s519 = scalar_select %p518, %s517, 5
        %s520 = smul.addr %s519, 8
        %s521 = scalar_lea.vmem %s0, %s520
        %s522 = smul.u32 3, %s30
      $region36: #{vit_forward.3} parent=31 // pred_fallthru
        _
      // Predicated region
      $region37: #{vit_forward.3} parent=31 // pred_check
        %p523 = pneg %p81
      $region38: #{vit_forward.3} parent=31 // pred_check_branch
        %525 = sbr.rel (%p523) target = $region40
      $region39: #{vit_forward.3} parent=31 // pred_region
        %p526 = scmp.lt.s32.totalorder %s31, 1
        %s527 = scalar_select %p526, %s31, 1
        %s528 = scalar_lea.vmem %s1, %s527
      $region40: #{vit_forward.3} parent=31 // pred_fallthru
        _
      // Predicated region
      $region41: #{vit_forward.3} parent=31 // pred_check
        %p529 = pneg %p107
      $region42: #{vit_forward.3} parent=31 // pred_check_branch
        %531 = sbr.rel (%p529) target = $region44
      $region43: #{vit_forward.3} parent=31 // pred_region
        %p532 = scmp.lt.s32.totalorder %s31, 1
        %s533 = scalar_select %p532, %s31, 1
        %s534 = scalar_lea.vmem %s2, %s533
      $region44: #{vit_forward.3} parent=31 // pred_fallthru
        _
      // Predicated region
      $region45: #{vit_forward.3} parent=31 // pred_check
        %p535 = pneg %p133
      $region46: #{vit_forward.3} parent=31 // pred_check_branch
        %537 = sbr.rel (%p535) target = $region48
      $region47: #{vit_forward.3} parent=31 // pred_region
        %p538 = scmp.lt.s32.totalorder %s31, 1
        %s539 = scalar_select %p538, %s31, 1
        %s540 = smul.addr %s539, 4
        %s541 = smul.addr %s540, 4
        %s542 = scalar_lea.vmem %s3, %s541
      $region48: #{vit_forward.3} parent=31 // pred_fallthru
        _
      // Predicated region
      $region49: #{vit_forward.3} parent=31 // pred_check
        %p543 = pneg %p159
      $region50: #{vit_forward.3} parent=31 // pred_check_branch
        %545 = sbr.rel (%p543) target = $region52
      $region51: #{vit_forward.3} parent=31 // pred_region
        %p546 = scmp.lt.s32.totalorder %s31, 1
        %s547 = scalar_select %p546, %s31, 1
        %s548 = scalar_lea.vmem %s4, %s547
      $region52: #{vit_forward.3} parent=31 // pred_fallthru
        _
      // Predicated region
      $region53: #{vit_forward.3} parent=31 // pred_check
        %p549 = pneg %p185
      $region54: #{vit_forward.3} parent=31 // pred_check_branch
        %551 = sbr.rel (%p549) target = $region56
      $region55: #{vit_forward.3} parent=31 // pred_region
        %p552 = scmp.lt.s32.totalorder %s31, 1
        %s553 = scalar_select %p552, %s31, 1
        %s554 = smul.addr %s553, 4
        %s555 = smul.addr %s554, 4
        %s556 = scalar_lea.vmem %s5, %s555
      $region56: #{vit_forward.3} parent=31 // pred_fallthru
        _
      // Predicated region
      $region57: #{vit_forward.3} parent=31 // pred_check
        %p557 = pneg %p211
      $region58: #{vit_forward.3} parent=31 // pred_check_branch
        %559 = sbr.rel (%p557) target = $region60
      $region59: #{vit_forward.3} parent=31 // pred_region
        %p560 = scmp.lt.s32.totalorder %s31, 1
        %s561 = scalar_select %p560, %s31, 1
        %s562 = scalar_lea.vmem %s6, %s561
      $region60: #{vit_forward.3} parent=31 // pred_fallthru
        _
      // Predicated region
      $region61: #{vit_forward.3} parent=31 // pred_check
        %p563 = pneg %p237
      $region62: #{vit_forward.3} parent=31 // pred_check_branch
        %565 = sbr.rel (%p563) target = $region64
      $region63: #{vit_forward.3} parent=31 // pred_region
        %p566 = scmp.lt.s32.totalorder %s31, 1
        %s567 = scalar_select %p566, %s31, 1
        %s568 = scalar_lea.vmem %s7, %s567
      $region64: #{vit_forward.3} parent=31 // pred_fallthru
        _
      // Predicated region
      $region65: #{vit_forward.3} parent=31 // pred_check
        %p569 = pneg %p263
      $region66: #{vit_forward.3} parent=31 // pred_check_branch
        %571 = sbr.rel (%p569) target = $region68
      $region67: #{vit_forward.3} parent=31 // pred_region
        %p572 = scmp.lt.s32.totalorder %s31, 1
        %s573 = scalar_select %p572, %s31, 1
        %s574 = scalar_lea.vmem %s8, %s573
      $region68: #{vit_forward.3} parent=31 // pred_fallthru
        _
      // Predicated region
      $region69: #{vit_forward.3} parent=31 // pred_check
        %p575 = pneg %p289
      $region70: #{vit_forward.3} parent=31 // pred_check_branch
        %577 = sbr.rel (%p575) target = $region72
      $region71: #{vit_forward.3} parent=31 // pred_region
        %p578 = scmp.lt.s32.totalorder %s31, 1
        %s579 = scalar_select %p578, %s31, 1
        %s580 = smul.addr %s579, 4
        %s581 = smul.addr %s580, 4
        %s582 = scalar_lea.vmem %s9, %s581
      $region72: #{vit_forward.3} parent=31 // pred_fallthru
        _
      // Predicated region
      $region73: #{vit_forward.3} parent=31 // pred_check
        %p583 = pneg %p315
      $region74: #{vit_forward.3} parent=31 // pred_check_branch
        %585 = sbr.rel (%p583) target = $region76
      $region75: #{vit_forward.3} parent=31 // pred_region
        %p586 = scmp.lt.s32.totalorder %s31, 1
        %s587 = scalar_select %p586, %s31, 1
        %s588 = scalar_lea.vmem %s10, %s587
      $region76: #{vit_forward.3} parent=31 // pred_fallthru
        _
      // Predicated region
      $region77: #{vit_forward.3} parent=31 // pred_check
        %p589 = pneg %p341
      $region78: #{vit_forward.3} parent=31 // pred_check_branch
        %591 = sbr.rel (%p589) target = $region80
      $region79: #{vit_forward.3} parent=31 // pred_region
        %p592 = scmp.lt.s32.totalorder %s31, 1
        %s593 = scalar_select %p592, %s31, 1
        %s594 = smul.addr %s593, 8
        %s595 = smul.addr %s594, 4
        %s596 = scalar_lea.vmem %s11, %s595
      $region80: #{vit_forward.3} parent=31 // pred_fallthru
        _
      // Predicated region
      $region81: #{vit_forward.3} parent=31 // pred_check
        %p597 = pneg %p367
      $region82: #{vit_forward.3} parent=31 // pred_check_branch
        %599 = sbr.rel (%p597) target = $region84
      $region83: #{vit_forward.3} parent=31 // pred_region
        %p600 = scmp.lt.s32.totalorder %s31, 1
        %s601 = scalar_select %p600, %s31, 1
        %s602 = scalar_lea.vmem %s12, %s601
      $region84: #{vit_forward.3} parent=31 // pred_fallthru
        _
    $region32: #{vit_forward.3} parent=5 // pred_fallthru
      _
    %p603 = scmp.le.s32.totalorder 1, %s23
    %p604 = scmp.lt.s32.totalorder %s23, 5
    %p605 = pnand %p603, %p604
    %p606 = pneg %p605
    // Predicated region
    $region85: #{vit_forward.3} parent=5 // pred_check
      _
    $region86: #{vit_forward.3} parent=5 // pred_check_branch
      %608 = sbr.rel (%p605) target = $region88
    $region87: #{vit_forward.3} parent=5 // pred_region
      %s609 = ssub.s32 %s23, 1
      %s610 = smul.u32 3, %s32
      %p611 = scmp.lt.s32.totalorder %s610, 5
      %s612 = scalar_select %p611, %s610, 5
      %s613 = smul.addr %s612, 8
      %s614 = scalar_lea.vmem %s0, %s613
      %p615 = pneg %p61
      %p616 = pneg %p58
      %p617 = scmp.lt.s32.totalorder %s33, 1
      %s618 = scalar_select %p617, %s33, 1
      %s619 = scalar_lea.vmem %s1, %s618
      %p620 = pneg %p87
      %p621 = pneg %p84
      %p622 = scmp.lt.s32.totalorder %s33, 1
      %s623 = scalar_select %p622, %s33, 1
      %s624 = scalar_lea.vmem %s2, %s623
      %p625 = pneg %p113
      %p626 = pneg %p110
      %p627 = scmp.lt.s32.totalorder %s33, 1
      %s628 = scalar_select %p627, %s33, 1
      %s629 = smul.addr %s628, 4
      %s630 = smul.addr %s629, 4
      %s631 = scalar_lea.vmem %s3, %s630
      %p632 = pneg %p139
      %p633 = pneg %p136
      %p634 = scmp.lt.s32.totalorder %s33, 1
      %s635 = scalar_select %p634, %s33, 1
      %s636 = scalar_lea.vmem %s4, %s635
      %p637 = pneg %p165
      %p638 = pneg %p162
      %p639 = scmp.lt.s32.totalorder %s33, 1
      %s640 = scalar_select %p639, %s33, 1
      %s641 = smul.addr %s640, 4
      %s642 = smul.addr %s641, 4
      %s643 = scalar_lea.vmem %s5, %s642
      %p644 = pneg %p191
      %p645 = pneg %p188
      %p646 = scmp.lt.s32.totalorder %s33, 1
      %s647 = scalar_select %p646, %s33, 1
      %s648 = scalar_lea.vmem %s6, %s647
      %p649 = pneg %p217
      %p650 = pneg %p214
      %p651 = scmp.lt.s32.totalorder %s33, 1
      %s652 = scalar_select %p651, %s33, 1
      %s653 = scalar_lea.vmem %s7, %s652
      %p654 = pneg %p243
      %p655 = pneg %p240
      %p656 = scmp.lt.s32.totalorder %s33, 1
      %s657 = scalar_select %p656, %s33, 1
      %s658 = scalar_lea.vmem %s8, %s657
      %p659 = pneg %p269
      %p660 = pneg %p266
      %p661 = scmp.lt.s32.totalorder %s33, 1
      %s662 = scalar_select %p661, %s33, 1
      %s663 = smul.addr %s662, 4
      %s664 = smul.addr %s663, 4
      %s665 = scalar_lea.vmem %s9, %s664
      %p666 = pneg %p295
      %p667 = pneg %p292
      %p668 = scmp.lt.s32.totalorder %s33, 1
      %s669 = scalar_select %p668, %s33, 1
      %s670 = scalar_lea.vmem %s10, %s669
      %p671 = pneg %p321
      %p672 = pneg %p318
      %p673 = scmp.lt.s32.totalorder %s33, 1
      %s674 = scalar_select %p673, %s33, 1
      %s675 = smul.addr %s674, 8
      %s676 = smul.addr %s675, 4
      %s677 = scalar_lea.vmem %s11, %s676
      %p678 = pneg %p347
      %p679 = pneg %p344
      %p680 = scmp.lt.s32.totalorder %s33, 1
      %s681 = scalar_select %p680, %s33, 1
      %s682 = scalar_lea.vmem %s12, %s681
      %p683 = pneg %p373
      %p684 = pneg %p370
      %p685 = pneg %p394
      %p686 = pneg %p391
      %p687 = pneg %p415
      %p688 = pneg %p412
      %p689 = pneg %p436
      %p690 = pneg %p433
      %p691 = pneg %p457
      %p692 = pneg %p454
      %p693 = pneg %p483
      %p694 = pneg %p480
      %p695 = scmp.lt.s32.totalorder %s32, 1
      %s696 = scalar_select %p695, %s32, 1
      %s697 = smul.addr %s696, 8
      %s698 = scalar_lea.vmem %s17, %s697
      %s699 = smul.u32 3, %s32
      %p700 = scmp.lt.s32.totalorder %s699, 5
      %s701 = scalar_select %p700, %s699, 5
      %s702 = smul.addr %s701, 8
      %s703 = scalar_lea.vmem %s0, %s702
      %s704 = smul.u32 3, %s32
      %p705 = scmp.lt.s32.totalorder %s33, 1
      %s706 = scalar_select %p705, %s33, 1
      %s707 = scalar_lea.vmem %s1, %s706
      %p708 = scmp.lt.s32.totalorder %s33, 1
      %s709 = scalar_select %p708, %s33, 1
      %s710 = scalar_lea.vmem %s2, %s709
      %p711 = scmp.lt.s32.totalorder %s33, 1
      %s712 = scalar_select %p711, %s33, 1
      %s713 = smul.addr %s712, 4
      %s714 = smul.addr %s713, 4
      %s715 = scalar_lea.vmem %s3, %s714
      %p716 = scmp.lt.s32.totalorder %s33, 1
      %s717 = scalar_select %p716, %s33, 1
      %s718 = scalar_lea.vmem %s4, %s717
      %p719 = scmp.lt.s32.totalorder %s33, 1
      %s720 = scalar_select %p719, %s33, 1
      %s721 = smul.addr %s720, 4
      %s722 = smul.addr %s721, 4
      %s723 = scalar_lea.vmem %s5, %s722
      %p724 = scmp.lt.s32.totalorder %s33, 1
      %s725 = scalar_select %p724, %s33, 1
      %s726 = scalar_lea.vmem %s6, %s725
      %p727 = scmp.lt.s32.totalorder %s33, 1
      %s728 = scalar_select %p727, %s33, 1
      %s729 = scalar_lea.vmem %s7, %s728
      %p730 = scmp.lt.s32.totalorder %s33, 1
      %s731 = scalar_select %p730, %s33, 1
      %s732 = scalar_lea.vmem %s8, %s731
      %p733 = scmp.lt.s32.totalorder %s33, 1
      %s734 = scalar_select %p733, %s33, 1
      %s735 = smul.addr %s734, 4
      %s736 = smul.addr %s735, 4
      %s737 = scalar_lea.vmem %s9, %s736
      %p738 = scmp.lt.s32.totalorder %s33, 1
      %s739 = scalar_select %p738, %s33, 1
      %s740 = scalar_lea.vmem %s10, %s739
      %p741 = scmp.lt.s32.totalorder %s33, 1
      %s742 = scalar_select %p741, %s33, 1
      %s743 = smul.addr %s742, 8
      %s744 = smul.addr %s743, 4
      %s745 = scalar_lea.vmem %s11, %s744
      %p746 = scmp.lt.s32.totalorder %s33, 1
      %s747 = scalar_select %p746, %s33, 1
      %s748 = scalar_lea.vmem %s12, %s747
      %p749 = scmp.lt.s32.totalorder %s32, 1
      %s750 = scalar_select %p749, %s32, 1
      %s751 = smul.addr %s750, 8
      %s752 = scalar_lea.vmem %s17, %s751
      %p754 = scmp.eq.s32.totalorder %s33, 0
      // Predicated region
      $region89: #{vit_forward.3} parent=87 // pred_check
        %p755 = pneg %p754
      $region90: #{vit_forward.3} parent=87 // pred_check_branch
        %757 = sbr.rel (%p755) target = $region92
      $region91: #{vit_forward.3} parent=87 // pred_region
        %v758 = vld [vmem:[%s703] sm:$0xff]
        %v759 = vld [vmem:[%s703 + $0x8] sm:$0xff]
        %v760 = vld [vmem:[%s703 + $0x10] sm:$0xff]
        %vm761 = vcmask 261120
        %762 = vst.msk [vmem:[#allocation2] sm:$0xff] %vm761, %v758
        %763 = vst.msk [vmem:[#allocation2 + $0x8] sm:$0xff] %vm761, %v759
        %764 = vst.msk [vmem:[#allocation2 + $0x10] sm:$0xff] %vm761, %v760
      $region92: #{vit_forward.3} parent=87 // pred_fallthru
        _
      %v765 = vld [vmem:[#allocation2] sm:$0xff]
      %v766 = vld [vmem:[#allocation2 + $0x8] sm:$0xff]
      %v767 = vld [vmem:[#allocation2 + $0x10] sm:$0xff]
      %v768 = vld [vmem:[%s707] sm:$0x1]
      %v769 = vld [vmem:[%s710] sm:$0x1]
      %vm770 = vcmask 261120
      %v771 = vsel %vm770, %v765, 0.0
      %772 = vadd.xlane.f32.xlu0 %v771
      %v773 = vpop.xlane.xlu0 %772
      %v774 = vsel %vm770, %v766, 0.0
      %775 = vadd.xlane.f32.xlu0 %v774
      %v776 = vpop.xlane.xlu0 %775
      %v777 = vsel %vm770, %v767, 0.0
      %778 = vadd.xlane.f32.xlu0 %v777
      %v779 = vpop.xlane.xlu0 %778
      %v780 = vrcp.pop 32.0
      %v781 = vmul.f32 %v773, %v780
      %v782 = vmul.f32 %v776, %v780
      %v783 = vmul.f32 %v779, %v780
      %v784 = vsub.f32 %v765, %v781
      %v785 = vsub.f32 %v766, %v782
      %v786 = vsub.f32 %v767, %v783
      %v787 = vmul.f32 %v784, %v784
      %v788 = vmul.f32 %v785, %v785
      %v789 = vmul.f32 %v786, %v786
      %v790 = vsel %vm770, %v787, 0.0
      %791 = vadd.xlane.f32.xlu0 %v790
      %v792 = vpop.xlane.xlu0 %791
      %v793 = vsel %vm770, %v788, 0.0
      %794 = vadd.xlane.f32.xlu0 %v793
      %v795 = vpop.xlane.xlu0 %794
      %v796 = vsel %vm770, %v789, 0.0
      %797 = vadd.xlane.f32.xlu0 %v796
      %v798 = vpop.xlane.xlu0 %797
      %v799 = vmul.f32 %v792, %v780
      %v800 = vmul.f32 %v795, %v780
      %v801 = vmul.f32 %v798, %v780
      %v802 = vadd.f32 %v799, 1e-05
      %v803 = vadd.f32 %v800, 1e-05
      %v804 = vadd.f32 %v801, 1e-05
      %v805 = vrsqrt.pop %v802
      %v806 = vrsqrt.pop %v803
      %v807 = vrsqrt.pop %v804
      %v808 = vmul.f32 %v784, %v805
      %v809 = vmul.f32 %v785, %v806
      %v810 = vmul.f32 %v786, %v807
      %v812 = vlaneseq
      %v813 = vshrl.u32 %v812, 7
      %v814 = vsub.s32 0, %v813
      %v815 = vrot.slane %v768, %v814
      %v817 = vmul.f32 %v808, %v815
      %v818 = vmul.f32 %v809, %v815
      %v819 = vmul.f32 %v810, %v815
      %v821 = vlaneseq
      %v822 = vshrl.u32 %v821, 7
      %v823 = vsub.s32 0, %v822
      %v824 = vrot.slane %v769, %v823
      %v826 = vadd.f32 %v817, %v824
      %v827 = vadd.f32 %v818, %v824
      %v828 = vadd.f32 %v819, %v824
      %v829 = vpack.c.bf16 %v827, %v826
      %v830 = vpack.c.bf16 %v828, %v828
      %v831 = vld [vmem:[%s715] sm:$0xf]
      %v832 = vld [vmem:[%s715 + $0x4] sm:$0xf]
      %v833 = vld [vmem:[%s715 + $0x8] sm:$0xf]
      %v834 = vld [vmem:[%s715 + $0xc] sm:$0xf]
      %v835 = vld [vmem:[%s718] sm:$0x1]
      %v837 = vlaneseq
      %v838 = vshrl.u32 %v837, 7
      %v839 = vsub.s32 0, %v838
      %v840 = vrot.slane %v835, %v839
      %v846 = vunpack.c.l.b16 %v831
      %v847 = vunpack.c.l.b16 %v832
      %v848 = vunpack.c.l.b16 %v833
      %v849 = vunpack.c.l.b16 %v834
      %v850 = vpack.c.b16 %v847, %v846
      %v851 = vpack.c.b16 %v849, %v848
      %v855 = vsel %vm770, %v829, 0
      %v858 = vsel %vm770, %v830, 0
      %860 = vmatprep.subr.bf16.mxu0 0
      %861 = vmatpush1.bf16.msra.mxu0 0
      %862 = vmatprep.subr.bf16.mxu0 0
      %863 = vmatpush1.bf16.msra.mxu0 0
      %864 = vmatprep.subr.bf16.mxu0 0
      %865 = vmatpush1.bf16.msra.mxu0 0
      %866 = vmatprep.subr.bf16.mxu0 0
      %867 = vmatpush1.bf16.msra.mxu0 0
      %868 = vmatprep.subr.bf16.mxu0 0
      %869 = vmatpush1.bf16.msra.mxu0 0
      %870 = vmatprep.subr.bf16.mxu0 0
      %871 = vmatpush1.bf16.msra.mxu0 0
      %872 = vmatprep.subr.bf16.mxu0 0
      %873 = vmatpush1.bf16.msra.mxu0 %v851
      %874 = vmatprep.subr.bf16.mxu0 0
      %875 = vmatpush1.bf16.msra.mxu0 %v850
      %876 = vmatprep.subr.bf16.mxu0 0
      %877 = vmatpush2.bf16.msra.mxu0 0
      %878 = vmatprep.subr.bf16.mxu0 0
      %879 = vmatpush2.bf16.msra.mxu0 0
      %880 = vmatprep.subr.bf16.mxu0 0
      %881 = vmatpush2.bf16.msra.mxu0 0
      %882 = vmatprep.subr.bf16.mxu0 0
      %883 = vmatpush2.bf16.msra.mxu0 0
      %884 = vmatprep.subr.bf16.mxu0 0
      %885 = vmatpush2.bf16.msra.mxu0 0
      %886 = vmatprep.subr.bf16.mxu0 0
      %887 = vmatpush2.bf16.msra.mxu0 0
      %888 = vmatprep.subr.bf16.mxu0 0
      %889 = vmatpush2.bf16.msra.mxu0 0
      %890 = vmatprep.subr.bf16.mxu0 0
      %891 = vmatpush2.bf16.msra.mxu0 0
      %892 = vmatprep.mubr.bf16.mxu0 0
      %893 = vmatmul.mubr.bf16.gmra.mxu0 %v855
      %v894 = vpop.f32.mrf.mxu0
      %v895 = vadd.f32 %v840, %v894
      %v896 = vpop.f32.mrf.mxu0
      %v897 = vpop.f32.mrf.mxu0
      %v898 = vadd.f32 %v840, %v897
      %v899 = vpop.f32.mrf.mxu0
      %900 = vmatprep.mubr.bf16.mxu0 0
      %901 = vmatmul.mubr.bf16.gmra.mxu0 %v858
      %v902 = vpop.f32.mrf.mxu0
      %v903 = vadd.f32 %v840, %v902
      %v904 = vpop.f32.mrf.mxu0
      %v905 = vpop.f32.mrf.mxu0
      %v906 = vpop.f32.mrf.mxu0
      %907 = vdwg.mxu0
      %911 = vrot.lane.b32.xlu0 %v895, 120
      %v912 = vpop.permute.xlu0 %911
      %913 = vrot.lane.b32.xlu0 %v898, 120
      %v914 = vpop.permute.xlu0 %913
      %915 = vrot.lane.b32.xlu0 %v903, 120
      %v916 = vpop.permute.xlu0 %915
      %920 = vrot.lane.b32.xlu0 %v895, 112
      %v921 = vpop.permute.xlu0 %920
      %922 = vrot.lane.b32.xlu0 %v898, 112
      %v923 = vpop.permute.xlu0 %922
      %924 = vrot.lane.b32.xlu0 %v903, 112
      %v925 = vpop.permute.xlu0 %924
      %929 = vrot.lane.b32.xlu0 %v895, 104
      %v930 = vpop.permute.xlu0 %929
      %931 = vrot.lane.b32.xlu0 %v898, 104
      %v932 = vpop.permute.xlu0 %931
      %933 = vrot.lane.b32.xlu0 %v903, 104
      %v934 = vpop.permute.xlu0 %933
      %v938 = vpack.c.bf16 %v898, %v895
      %v939 = vpack.c.bf16 %v903, %v903
      %v940 = vpack.c.bf16 %v914, %v912
      %v941 = vpack.c.bf16 %v916, %v916
      %v942 = vpack.c.bf16 %v923, %v921
      %v943 = vpack.c.bf16 %v925, %v925
      %v944 = vpack.c.bf16 %v932, %v930
      %v945 = vpack.c.bf16 %v934, %v934
      %948 = vrot.lane.b32.xlu0 %v938, 96
      %v949 = vpop.permute.xlu0 %948
      %950 = vrot.lane.b32.xlu0 %v939, 96
      %v951 = vpop.permute.xlu0 %950
      %vm952 = vcmask 64512
      %v954 = vsel %vm952, %v938, 0
      %v957 = vsel %vm952, %v939, 0
      %v960 = vsel %vm952, %v949, 0
      %v963 = vsel %vm952, %v951, 0
      %965 = vmatprep.subr.bf16.mxu0 0
      %966 = vmatpush1.bf16.xpose.msra.mxu0 0
      %967 = vmatprep.subr.bf16.mxu0 0
      %968 = vmatpush1.bf16.xpose.msra.mxu0 0
      %969 = vmatprep.subr.bf16.mxu0 0
      %970 = vmatpush1.bf16.xpose.msra.mxu0 0
      %971 = vmatprep.subr.bf16.mxu0 0
      %972 = vmatpush1.bf16.xpose.msra.mxu0 0
      %973 = vmatprep.subr.bf16.mxu0 0
      %974 = vmatpush1.bf16.xpose.msra.mxu0 0
      %975 = vmatprep.subr.bf16.mxu0 0
      %976 = vmatpush1.bf16.xpose.msra.mxu0 0
      %977 = vmatprep.subr.bf16.mxu0 0
      %978 = vmatpush1.bf16.xpose.msra.mxu0 %v963
      %979 = vmatprep.subr.bf16.mxu0 0
      %980 = vmatpush1.bf16.xpose.msra.mxu0 %v960
      %981 = vmatprep.subr.bf16.mxu0 0
      %982 = vmatpush2.bf16.xpose.msra.mxu0 0
      %983 = vmatprep.subr.bf16.mxu0 0
      %984 = vmatpush2.bf16.xpose.msra.mxu0 0
      %985 = vmatprep.subr.bf16.mxu0 0
      %986 = vmatpush2.bf16.xpose.msra.mxu0 0
      %987 = vmatprep.subr.bf16.mxu0 0
      %988 = vmatpush2.bf16.xpose.msra.mxu0 0
      %989 = vmatprep.subr.bf16.mxu0 0
      %990 = vmatpush2.bf16.xpose.msra.mxu0 0
      %991 = vmatprep.subr.bf16.mxu0 0
      %992 = vmatpush2.bf16.xpose.msra.mxu0 0
      %993 = vmatprep.subr.bf16.mxu0 0
      %994 = vmatpush2.bf16.xpose.msra.mxu0 0
      %995 = vmatprep.subr.bf16.mxu0 0
      %996 = vmatpush2.bf16.xpose.msra.mxu0 0
      %997 = vmatprep.mubr.bf16.mxu0 0
      %998 = vmatmul.mubr.bf16.gmra.mxu0 %v954
      %v999 = vpop.f32.mrf.mxu0
      %v1000 = vadd.f32 0.0, %v999
      %v1001 = vpop.f32.mrf.mxu0
      %v1002 = vpop.f32.mrf.mxu0
      %v1003 = vadd.f32 0.0, %v1002
      %v1004 = vpop.f32.mrf.mxu0
      %1005 = vmatprep.mubr.bf16.mxu0 0
      %1006 = vmatmul.mubr.bf16.gmra.mxu0 %v957
      %v1007 = vpop.f32.mrf.mxu0
      %v1008 = vadd.f32 0.0, %v1007
      %v1009 = vpop.f32.mrf.mxu0
      %v1010 = vpop.f32.mrf.mxu0
      %v1011 = vpop.f32.mrf.mxu0
      %1012 = vdwg.mxu0
      %1015 = vrot.lane.b32.xlu0 %v940, 96
      %v1016 = vpop.permute.xlu0 %1015
      %1017 = vrot.lane.b32.xlu0 %v941, 96
      %v1018 = vpop.permute.xlu0 %1017
      %v1020 = vsel %vm952, %v940, 0
      %v1023 = vsel %vm952, %v941, 0
      %v1026 = vsel %vm952, %v1016, 0
      %v1029 = vsel %vm952, %v1018, 0
      %1031 = vmatprep.subr.bf16.mxu0 0
      %1032 = vmatpush1.bf16.xpose.msra.mxu0 0
      %1033 = vmatprep.subr.bf16.mxu0 0
      %1034 = vmatpush1.bf16.xpose.msra.mxu0 0
      %1035 = vmatprep.subr.bf16.mxu0 0
      %1036 = vmatpush1.bf16.xpose.msra.mxu0 0
      %1037 = vmatprep.subr.bf16.mxu0 0
      %1038 = vmatpush1.bf16.xpose.msra.mxu0 0
      %1039 = vmatprep.subr.bf16.mxu0 0
      %1040 = vmatpush1.bf16.xpose.msra.mxu0 0
      %1041 = vmatprep.subr.bf16.mxu0 0
      %1042 = vmatpush1.bf16.xpose.msra.mxu0 0
      %1043 = vmatprep.subr.bf16.mxu0 0
      %1044 = vmatpush1.bf16.xpose.msra.mxu0 %v1029
      %1045 = vmatprep.subr.bf16.mxu0 0
      %1046 = vmatpush1.bf16.xpose.msra.mxu0 %v1026
      %1047 = vmatprep.subr.bf16.mxu0 0
      %1048 = vmatpush2.bf16.xpose.msra.mxu0 0
      %1049 = vmatprep.subr.bf16.mxu0 0
      %1050 = vmatpush2.bf16.xpose.msra.mxu0 0
      %1051 = vmatprep.subr.bf16.mxu0 0
      %1052 = vmatpush2.bf16.xpose.msra.mxu0 0
      %1053 = vmatprep.subr.bf16.mxu0 0
      %1054 = vmatpush2.bf16.xpose.msra.mxu0 0
      %1055 = vmatprep.subr.bf16.mxu0 0
      %1056 = vmatpush2.bf16.xpose.msra.mxu0 0
      %1057 = vmatprep.subr.bf16.mxu0 0
      %1058 = vmatpush2.bf16.xpose.msra.mxu0 0
      %1059 = vmatprep.subr.bf16.mxu0 0
      %1060 = vmatpush2.bf16.xpose.msra.mxu0 0
      %1061 = vmatprep.subr.bf16.mxu0 0
      %1062 = vmatpush2.bf16.xpose.msra.mxu0 0
      %1063 = vmatprep.mubr.bf16.mxu0 0
      %1064 = vmatmul.mubr.bf16.gmra.mxu0 %v1020
      %v1065 = vpop.f32.mrf.mxu0
      %v1066 = vadd.f32 0.0, %v1065
      %v1067 = vpop.f32.mrf.mxu0
      %v1068 = vpop.f32.mrf.mxu0
      %v1069 = vadd.f32 0.0, %v1068
      %v1070 = vpop.f32.mrf.mxu0
      %1071 = vmatprep.mubr.bf16.mxu0 0
      %1072 = vmatmul.mubr.bf16.gmra.mxu0 %v1023
      %v1073 = vpop.f32.mrf.mxu0
      %v1074 = vadd.f32 0.0, %v1073
      %v1075 = vpop.f32.mrf.mxu0
      %v1076 = vpop.f32.mrf.mxu0
      %v1077 = vpop.f32.mrf.mxu0
      %1078 = vdwg.mxu0
      %1081 = vrot.lane.b32.xlu0 %v942, 96
      %v1082 = vpop.permute.xlu0 %1081
      %1083 = vrot.lane.b32.xlu0 %v943, 96
      %v1084 = vpop.permute.xlu0 %1083
      %v1086 = vsel %vm952, %v942, 0
      %v1089 = vsel %vm952, %v943, 0
      %v1092 = vsel %vm952, %v1082, 0
      %v1095 = vsel %vm952, %v1084, 0
      %1097 = vmatprep.subr.bf16.mxu0 0
      %1098 = vmatpush1.bf16.xpose.msra.mxu0 0
      %1099 = vmatprep.subr.bf16.mxu0 0
      %1100 = vmatpush1.bf16.xpose.msra.mxu0 0
      %1101 = vmatprep.subr.bf16.mxu0 0
      %1102 = vmatpush1.bf16.xpose.msra.mxu0 0
      %1103 = vmatprep.subr.bf16.mxu0 0
      %1104 = vmatpush1.bf16.xpose.msra.mxu0 0
      %1105 = vmatprep.subr.bf16.mxu0 0
      %1106 = vmatpush1.bf16.xpose.msra.mxu0 0
      %1107 = vmatprep.subr.bf16.mxu0 0
      %1108 = vmatpush1.bf16.xpose.msra.mxu0 0
      %1109 = vmatprep.subr.bf16.mxu0 0
      %1110 = vmatpush1.bf16.xpose.msra.mxu0 %v1095
      %1111 = vmatprep.subr.bf16.mxu0 0
      %1112 = vmatpush1.bf16.xpose.msra.mxu0 %v1092
      %1113 = vmatprep.subr.bf16.mxu0 0
      %1114 = vmatpush2.bf16.xpose.msra.mxu0 0
      %1115 = vmatprep.subr.bf16.mxu0 0
      %1116 = vmatpush2.bf16.xpose.msra.mxu0 0
      %1117 = vmatprep.subr.bf16.mxu0 0
      %1118 = vmatpush2.bf16.xpose.msra.mxu0 0
      %1119 = vmatprep.subr.bf16.mxu0 0
      %1120 = vmatpush2.bf16.xpose.msra.mxu0 0
      %1121 = vmatprep.subr.bf16.mxu0 0
      %1122 = vmatpush2.bf16.xpose.msra.mxu0 0
      %1123 = vmatprep.subr.bf16.mxu0 0
      %1124 = vmatpush2.bf16.xpose.msra.mxu0 0
      %1125 = vmatprep.subr.bf16.mxu0 0
      %1126 = vmatpush2.bf16.xpose.msra.mxu0 0
      %1127 = vmatprep.subr.bf16.mxu0 0
      %1128 = vmatpush2.bf16.xpose.msra.mxu0 0
      %1129 = vmatprep.mubr.bf16.mxu0 0
      %1130 = vmatmul.mubr.bf16.gmra.mxu0 %v1086
      %v1131 = vpop.f32.mrf.mxu0
      %v1132 = vadd.f32 0.0, %v1131
      %v1133 = vpop.f32.mrf.mxu0
      %v1134 = vpop.f32.mrf.mxu0
      %v1135 = vadd.f32 0.0, %v1134
      %v1136 = vpop.f32.mrf.mxu0
      %1137 = vmatprep.mubr.bf16.mxu0 0
      %1138 = vmatmul.mubr.bf16.gmra.mxu0 %v1089
      %v1139 = vpop.f32.mrf.mxu0
      %v1140 = vadd.f32 0.0, %v1139
      %v1141 = vpop.f32.mrf.mxu0
      %v1142 = vpop.f32.mrf.mxu0
      %v1143 = vpop.f32.mrf.mxu0
      %1144 = vdwg.mxu0
      %1147 = vrot.lane.b32.xlu0 %v944, 96
      %v1148 = vpop.permute.xlu0 %1147
      %1149 = vrot.lane.b32.xlu0 %v945, 96
      %v1150 = vpop.permute.xlu0 %1149
      %v1152 = vsel %vm952, %v944, 0
      %v1155 = vsel %vm952, %v945, 0
      %v1158 = vsel %vm952, %v1148, 0
      %v1161 = vsel %vm952, %v1150, 0
      %1163 = vmatprep.subr.bf16.mxu0 0
      %1164 = vmatpush1.bf16.xpose.msra.mxu0 0
      %1165 = vmatprep.subr.bf16.mxu0 0
      %1166 = vmatpush1.bf16.xpose.msra.mxu0 0
      %1167 = vmatprep.subr.bf16.mxu0 0
      %1168 = vmatpush1.bf16.xpose.msra.mxu0 0
      %1169 = vmatprep.subr.bf16.mxu0 0
      %1170 = vmatpush1.bf16.xpose.msra.mxu0 0
      %1171 = vmatprep.subr.bf16.mxu0 0
      %1172 = vmatpush1.bf16.xpose.msra.mxu0 0
      %1173 = vmatprep.subr.bf16.mxu0 0
      %1174 = vmatpush1.bf16.xpose.msra.mxu0 0
      %1175 = vmatprep.subr.bf16.mxu0 0
      %1176 = vmatpush1.bf16.xpose.msra.mxu0 %v1161
      %1177 = vmatprep.subr.bf16.mxu0 0
      %1178 = vmatpush1.bf16.xpose.msra.mxu0 %v1158
      %1179 = vmatprep.subr.bf16.mxu0 0
      %1180 = vmatpush2.bf16.xpose.msra.mxu0 0
      %1181 = vmatprep.subr.bf16.mxu0 0
      %1182 = vmatpush2.bf16.xpose.msra.mxu0 0
      %1183 = vmatprep.subr.bf16.mxu0 0
      %1184 = vmatpush2.bf16.xpose.msra.mxu0 0
      %1185 = vmatprep.subr.bf16.mxu0 0
      %1186 = vmatpush2.bf16.xpose.msra.mxu0 0
      %1187 = vmatprep.subr.bf16.mxu0 0
      %1188 = vmatpush2.bf16.xpose.msra.mxu0 0
      %1189 = vmatprep.subr.bf16.mxu0 0
      %1190 = vmatpush2.bf16.xpose.msra.mxu0 0
      %1191 = vmatprep.subr.bf16.mxu0 0
      %1192 = vmatpush2.bf16.xpose.msra.mxu0 0
      %1193 = vmatprep.subr.bf16.mxu0 0
      %1194 = vmatpush2.bf16.xpose.msra.mxu0 0
      %1195 = vmatprep.mubr.bf16.mxu0 0
      %1196 = vmatmul.mubr.bf16.gmra.mxu0 %v1152
      %v1197 = vpop.f32.mrf.mxu0
      %v1198 = vadd.f32 0.0, %v1197
      %v1199 = vpop.f32.mrf.mxu0
      %v1200 = vpop.f32.mrf.mxu0
      %v1201 = vadd.f32 0.0, %v1200
      %v1202 = vpop.f32.mrf.mxu0
      %1203 = vmatprep.mubr.bf16.mxu0 0
      %1204 = vmatmul.mubr.bf16.gmra.mxu0 %v1155
      %v1205 = vpop.f32.mrf.mxu0
      %v1206 = vadd.f32 0.0, %v1205
      %v1207 = vpop.f32.mrf.mxu0
      %v1208 = vpop.f32.mrf.mxu0
      %v1209 = vpop.f32.mrf.mxu0
      %1210 = vdwg.mxu0
      %v1211 = vlaneseq
      %v1212 = vand.u32 %v1211, 127
      %vm1213 = vcmp.lt.s32.totalorder %v1212, 17
      %v1214 = vsel %vm1213, 1, 0
      %vm1215 = vcmp.eq.s32.totalorder %v1214, 1
      %v1216 = vsel %vm1215, %v1000, -1e+30
      %v1217 = vsel %vm1215, %v1003, -1e+30
      %v1218 = vsel %vm1215, %v1008, -1e+30
      %v1219 = vsel %vm1215, %v1066, -1e+30
      %v1220 = vsel %vm1215, %v1069, -1e+30
      %v1221 = vsel %vm1215, %v1074, -1e+30
      %v1222 = vsel %vm1215, %v1132, -1e+30
      %v1223 = vsel %vm1215, %v1135, -1e+30
      %v1224 = vsel %vm1215, %v1140, -1e+30
      %v1225 = vsel %vm1215, %v1198, -1e+30
      %v1226 = vsel %vm1215, %v1201, -1e+30
      %v1227 = vsel %vm1215, %v1206, -1e+30
      %vm1228 = vcmask 195584
      %v1229 = vsel %vm1228, %v1216, -inf
      %1230 = vmax.xlane.f32.xlu0 %v1229
      %v1231 = vpop.xlane.xlu0 %1230
      %v1232 = vsel %vm1228, %v1217, -inf
      %1233 = vmax.xlane.f32.xlu0 %v1232
      %v1234 = vpop.xlane.xlu0 %1233
      %v1235 = vsel %vm1228, %v1218, -inf
      %1236 = vmax.xlane.f32.xlu0 %v1235
      %v1237 = vpop.xlane.xlu0 %1236
      %v1238 = vsel %vm1228, %v1219, -inf
      %1239 = vmax.xlane.f32.xlu0 %v1238
      %v1240 = vpop.xlane.xlu0 %1239
      %v1241 = vsel %vm1228, %v1220, -inf
      %1242 = vmax.xlane.f32.xlu0 %v1241
      %v1243 = vpop.xlane.xlu0 %1242
      %v1244 = vsel %vm1228, %v1221, -inf
      %1245 = vmax.xlane.f32.xlu0 %v1244
      %v1246 = vpop.xlane.xlu0 %1245
      %v1247 = vsel %vm1228, %v1222, -inf
      %1248 = vmax.xlane.f32.xlu0 %v1247
      %v1249 = vpop.xlane.xlu0 %1248
      %v1250 = vsel %vm1228, %v1223, -inf
      %1251 = vmax.xlane.f32.xlu0 %v1250
      %v1252 = vpop.xlane.xlu0 %1251
      %v1253 = vsel %vm1228, %v1224, -inf
      %1254 = vmax.xlane.f32.xlu0 %v1253
      %v1255 = vpop.xlane.xlu0 %1254
      %v1256 = vsel %vm1228, %v1225, -inf
      %1257 = vmax.xlane.f32.xlu0 %v1256
      %v1258 = vpop.xlane.xlu0 %1257
      %v1259 = vsel %vm1228, %v1226, -inf
      %1260 = vmax.xlane.f32.xlu0 %v1259
      %v1261 = vpop.xlane.xlu0 %1260
      %v1262 = vsel %vm1228, %v1227, -inf
      %1263 = vmax.xlane.f32.xlu0 %v1262
      %v1264 = vpop.xlane.xlu0 %1263
      %v1265 = vsub.f32 %v1216, %v1231
      %v1266 = vsub.f32 %v1217, %v1234
      %v1267 = vsub.f32 %v1218, %v1237
      %v1268 = vsub.f32 %v1219, %v1240
      %v1269 = vsub.f32 %v1220, %v1243
      %v1270 = vsub.f32 %v1221, %v1246
      %v1271 = vsub.f32 %v1222, %v1249
      %v1272 = vsub.f32 %v1223, %v1252
      %v1273 = vsub.f32 %v1224, %v1255
      %v1274 = vsub.f32 %v1225, %v1258
      %v1275 = vsub.f32 %v1226, %v1261
      %v1276 = vsub.f32 %v1227, %v1264
      %v1277 = vmul.f32 %v1265, 1.442695
      %v1278 = vpow.pop %v1277
      %v1279 = vmul.f32 %v1266, 1.442695
      %v1280 = vpow.pop %v1279
      %v1281 = vmul.f32 %v1267, 1.442695
      %v1282 = vpow.pop %v1281
      %v1283 = vmul.f32 %v1268, 1.442695
      %v1284 = vpow.pop %v1283
      %v1285 = vmul.f32 %v1269, 1.442695
      %v1286 = vpow.pop %v1285
      %v1287 = vmul.f32 %v1270, 1.442695
      %v1288 = vpow.pop %v1287
      %v1289 = vmul.f32 %v1271, 1.442695
      %v1290 = vpow.pop %v1289
      %v1291 = vmul.f32 %v1272, 1.442695
      %v1292 = vpow.pop %v1291
      %v1293 = vmul.f32 %v1273, 1.442695
      %v1294 = vpow.pop %v1293
      %v1295 = vmul.f32 %v1274, 1.442695
      %v1296 = vpow.pop %v1295
      %v1297 = vmul.f32 %v1275, 1.442695
      %v1298 = vpow.pop %v1297
      %v1299 = vmul.f32 %v1276, 1.442695
      %v1300 = vpow.pop %v1299
      %v1301 = vsel %vm1228, %v1278, 0.0
      %1302 = vadd.xlane.f32.xlu0 %v1301
      %v1303 = vpop.xlane.xlu0 %1302
      %v1304 = vsel %vm1228, %v1280, 0.0
      %1305 = vadd.xlane.f32.xlu0 %v1304
      %v1306 = vpop.xlane.xlu0 %1305
      %v1307 = vsel %vm1228, %v1282, 0.0
      %1308 = vadd.xlane.f32.xlu0 %v1307
      %v1309 = vpop.xlane.xlu0 %1308
      %v1310 = vsel %vm1228, %v1284, 0.0
      %1311 = vadd.xlane.f32.xlu0 %v1310
      %v1312 = vpop.xlane.xlu0 %1311
      %v1313 = vsel %vm1228, %v1286, 0.0
      %1314 = vadd.xlane.f32.xlu0 %v1313
      %v1315 = vpop.xlane.xlu0 %1314
      %v1316 = vsel %vm1228, %v1288, 0.0
      %1317 = vadd.xlane.f32.xlu0 %v1316
      %v1318 = vpop.xlane.xlu0 %1317
      %v1319 = vsel %vm1228, %v1290, 0.0
      %1320 = vadd.xlane.f32.xlu0 %v1319
      %v1321 = vpop.xlane.xlu0 %1320
      %v1322 = vsel %vm1228, %v1292, 0.0
      %1323 = vadd.xlane.f32.xlu0 %v1322
      %v1324 = vpop.xlane.xlu0 %1323
      %v1325 = vsel %vm1228, %v1294, 0.0
      %1326 = vadd.xlane.f32.xlu0 %v1325
      %v1327 = vpop.xlane.xlu0 %1326
      %v1328 = vsel %vm1228, %v1296, 0.0
      %1329 = vadd.xlane.f32.xlu0 %v1328
      %v1330 = vpop.xlane.xlu0 %1329
      %v1331 = vsel %vm1228, %v1298, 0.0
      %1332 = vadd.xlane.f32.xlu0 %v1331
      %v1333 = vpop.xlane.xlu0 %1332
      %v1334 = vsel %vm1228, %v1300, 0.0
      %1335 = vadd.xlane.f32.xlu0 %v1334
      %v1336 = vpop.xlane.xlu0 %1335
      %v1337 = vrcp.pop %v1303
      %v1338 = vrcp.pop %v1306
      %v1339 = vrcp.pop %v1309
      %v1340 = vrcp.pop %v1312
      %v1341 = vrcp.pop %v1315
      %v1342 = vrcp.pop %v1318
      %v1343 = vrcp.pop %v1321
      %v1344 = vrcp.pop %v1324
      %v1345 = vrcp.pop %v1327
      %v1346 = vrcp.pop %v1330
      %v1347 = vrcp.pop %v1333
      %v1348 = vrcp.pop %v1336
      %v1349 = vmul.f32 %v1278, %v1337
      %v1350 = vmul.f32 %v1280, %v1338
      %v1351 = vmul.f32 %v1282, %v1339
      %v1352 = vmul.f32 %v1284, %v1340
      %v1353 = vmul.f32 %v1286, %v1341
      %v1354 = vmul.f32 %v1288, %v1342
      %v1355 = vmul.f32 %v1290, %v1343
      %v1356 = vmul.f32 %v1292, %v1344
      %v1357 = vmul.f32 %v1294, %v1345
      %v1358 = vmul.f32 %v1296, %v1346
      %v1359 = vmul.f32 %v1298, %v1347
      %v1360 = vmul.f32 %v1300, %v1348
      %v1361 = vpack.c.bf16 %v1350, %v1349
      %v1362 = vpack.c.bf16 %v1351, %v1351
      %v1363 = vpack.c.bf16 %v1353, %v1352
      %v1364 = vpack.c.bf16 %v1354, %v1354
      %v1365 = vpack.c.bf16 %v1356, %v1355
      %v1366 = vpack.c.bf16 %v1357, %v1357
      %v1367 = vpack.c.bf16 %v1359, %v1358
      %v1368 = vpack.c.bf16 %v1360, %v1360
      %1369 = vrot.lane.b32.xlu0 %v938, 64
      %v1370 = vpop.permute.xlu0 %1369
      %1371 = vrot.lane.b32.xlu0 %v939, 64
      %v1372 = vpop.permute.xlu0 %1371
      %v1375 = vsel %vm1228, %v1361, 0
      %v1378 = vsel %vm1228, %v1362, 0
      %vm1380 = vcmask 1043456
      %v1382 = vsel %vm1380, %v1372, 0
      %1384 = vmatprep.subr.bf16.mxu0 0
      %1385 = vmatpush1.bf16.msra.mxu0 0
      %1386 = vmatprep.subr.bf16.mxu0 0
      %1387 = vmatpush1.bf16.msra.mxu0 0
      %1388 = vmatprep.subr.bf16.mxu0 0
      %1389 = vmatpush1.bf16.msra.mxu0 0
      %1390 = vmatprep.subr.bf16.mxu0 0
      %1391 = vmatpush1.bf16.msra.mxu0 0
      %1392 = vmatprep.subr.bf16.mxu0 0
      %1393 = vmatpush1.bf16.msra.mxu0 0
      %1394 = vmatprep.subr.bf16.mxu0 0
      %1395 = vmatpush1.bf16.msra.mxu0 0
      %1396 = vmatprep.subr.bf16.mxu0 0
      %1397 = vmatpush1.bf16.msra.mxu0 %v1382
      %1398 = vmatprep.subr.bf16.mxu0 0
      %1399 = vmatpush1.bf16.msra.mxu0 %v1370
      %1400 = vmatprep.subr.bf16.mxu0 0
      %1401 = vmatpush2.bf16.msra.mxu0 0
      %1402 = vmatprep.subr.bf16.mxu0 0
      %1403 = vmatpush2.bf16.msra.mxu0 0
      %1404 = vmatprep.subr.bf16.mxu0 0
      %1405 = vmatpush2.bf16.msra.mxu0 0
      %1406 = vmatprep.subr.bf16.mxu0 0
      %1407 = vmatpush2.bf16.msra.mxu0 0
      %1408 = vmatprep.subr.bf16.mxu0 0
      %1409 = vmatpush2.bf16.msra.mxu0 0
      %1410 = vmatprep.subr.bf16.mxu0 0
      %1411 = vmatpush2.bf16.msra.mxu0 0
      %1412 = vmatprep.subr.bf16.mxu0 0
      %1413 = vmatpush2.bf16.msra.mxu0 0
      %1414 = vmatprep.subr.bf16.mxu0 0
      %1415 = vmatpush2.bf16.msra.mxu0 0
      %1416 = vmatprep.mubr.bf16.mxu0 0
      %1417 = vmatmul.mubr.bf16.gmra.mxu0 %v1375
      %v1418 = vpop.f32.mrf.mxu0
      %v1419 = vadd.f32 0.0, %v1418
      %v1420 = vpop.f32.mrf.mxu0
      %v1421 = vpop.f32.mrf.mxu0
      %v1422 = vadd.f32 0.0, %v1421
      %v1423 = vpop.f32.mrf.mxu0
      %1424 = vmatprep.mubr.bf16.mxu0 0
      %1425 = vmatmul.mubr.bf16.gmra.mxu0 %v1378
      %v1426 = vpop.f32.mrf.mxu0
      %v1427 = vadd.f32 0.0, %v1426
      %v1428 = vpop.f32.mrf.mxu0
      %v1429 = vpop.f32.mrf.mxu0
      %v1430 = vpop.f32.mrf.mxu0
      %1431 = vdwg.mxu0
      %1432 = vrot.lane.b32.xlu0 %v940, 64
      %v1433 = vpop.permute.xlu0 %1432
      %1434 = vrot.lane.b32.xlu0 %v941, 64
      %v1435 = vpop.permute.xlu0 %1434
      %v1438 = vsel %vm1228, %v1363, 0
      %v1441 = vsel %vm1228, %v1364, 0
      %v1444 = vsel %vm1380, %v1435, 0
      %1446 = vmatprep.subr.bf16.mxu0 0
      %1447 = vmatpush1.bf16.msra.mxu0 0
      %1448 = vmatprep.subr.bf16.mxu0 0
      %1449 = vmatpush1.bf16.msra.mxu0 0
      %1450 = vmatprep.subr.bf16.mxu0 0
      %1451 = vmatpush1.bf16.msra.mxu0 0
      %1452 = vmatprep.subr.bf16.mxu0 0
      %1453 = vmatpush1.bf16.msra.mxu0 0
      %1454 = vmatprep.subr.bf16.mxu0 0
      %1455 = vmatpush1.bf16.msra.mxu0 0
      %1456 = vmatprep.subr.bf16.mxu0 0
      %1457 = vmatpush1.bf16.msra.mxu0 0
      %1458 = vmatprep.subr.bf16.mxu0 0
      %1459 = vmatpush1.bf16.msra.mxu0 %v1444
      %1460 = vmatprep.subr.bf16.mxu0 0
      %1461 = vmatpush1.bf16.msra.mxu0 %v1433
      %1462 = vmatprep.subr.bf16.mxu0 0
      %1463 = vmatpush2.bf16.msra.mxu0 0
      %1464 = vmatprep.subr.bf16.mxu0 0
      %1465 = vmatpush2.bf16.msra.mxu0 0
      %1466 = vmatprep.subr.bf16.mxu0 0
      %1467 = vmatpush2.bf16.msra.mxu0 0
      %1468 = vmatprep.subr.bf16.mxu0 0
      %1469 = vmatpush2.bf16.msra.mxu0 0
      %1470 = vmatprep.subr.bf16.mxu0 0
      %1471 = vmatpush2.bf16.msra.mxu0 0
      %1472 = vmatprep.subr.bf16.mxu0 0
      %1473 = vmatpush2.bf16.msra.mxu0 0
      %1474 = vmatprep.subr.bf16.mxu0 0
      %1475 = vmatpush2.bf16.msra.mxu0 0
      %1476 = vmatprep.subr.bf16.mxu0 0
      %1477 = vmatpush2.bf16.msra.mxu0 0
      %1478 = vmatprep.mubr.bf16.mxu0 0
      %1479 = vmatmul.mubr.bf16.gmra.mxu0 %v1438
      %v1480 = vpop.f32.mrf.mxu0
      %v1481 = vadd.f32 0.0, %v1480
      %v1482 = vpop.f32.mrf.mxu0
      %v1483 = vpop.f32.mrf.mxu0
      %v1484 = vadd.f32 0.0, %v1483
      %v1485 = vpop.f32.mrf.mxu0
      %1486 = vmatprep.mubr.bf16.mxu0 0
      %1487 = vmatmul.mubr.bf16.gmra.mxu0 %v1441
      %v1488 = vpop.f32.mrf.mxu0
      %v1489 = vadd.f32 0.0, %v1488
      %v1490 = vpop.f32.mrf.mxu0
      %v1491 = vpop.f32.mrf.mxu0
      %v1492 = vpop.f32.mrf.mxu0
      %1493 = vdwg.mxu0
      %1494 = vrot.lane.b32.xlu0 %v942, 64
      %v1495 = vpop.permute.xlu0 %1494
      %1496 = vrot.lane.b32.xlu0 %v943, 64
      %v1497 = vpop.permute.xlu0 %1496
      %v1500 = vsel %vm1228, %v1365, 0
      %v1503 = vsel %vm1228, %v1366, 0
      %v1506 = vsel %vm1380, %v1497, 0
      %1508 = vmatprep.subr.bf16.mxu0 0
      %1509 = vmatpush1.bf16.msra.mxu0 0
      %1510 = vmatprep.subr.bf16.mxu0 0
      %1511 = vmatpush1.bf16.msra.mxu0 0
      %1512 = vmatprep.subr.bf16.mxu0 0
      %1513 = vmatpush1.bf16.msra.mxu0 0
      %1514 = vmatprep.subr.bf16.mxu0 0
      %1515 = vmatpush1.bf16.msra.mxu0 0
      %1516 = vmatprep.subr.bf16.mxu0 0
      %1517 = vmatpush1.bf16.msra.mxu0 0
      %1518 = vmatprep.subr.bf16.mxu0 0
      %1519 = vmatpush1.bf16.msra.mxu0 0
      %1520 = vmatprep.subr.bf16.mxu0 0
      %1521 = vmatpush1.bf16.msra.mxu0 %v1506
      %1522 = vmatprep.subr.bf16.mxu0 0
      %1523 = vmatpush1.bf16.msra.mxu0 %v1495
      %1524 = vmatprep.subr.bf16.mxu0 0
      %1525 = vmatpush2.bf16.msra.mxu0 0
      %1526 = vmatprep.subr.bf16.mxu0 0
      %1527 = vmatpush2.bf16.msra.mxu0 0
      %1528 = vmatprep.subr.bf16.mxu0 0
      %1529 = vmatpush2.bf16.msra.mxu0 0
      %1530 = vmatprep.subr.bf16.mxu0 0
      %1531 = vmatpush2.bf16.msra.mxu0 0
      %1532 = vmatprep.subr.bf16.mxu0 0
      %1533 = vmatpush2.bf16.msra.mxu0 0
      %1534 = vmatprep.subr.bf16.mxu0 0
      %1535 = vmatpush2.bf16.msra.mxu0 0
      %1536 = vmatprep.subr.bf16.mxu0 0
      %1537 = vmatpush2.bf16.msra.mxu0 0
      %1538 = vmatprep.subr.bf16.mxu0 0
      %1539 = vmatpush2.bf16.msra.mxu0 0
      %1540 = vmatprep.mubr.bf16.mxu0 0
      %1541 = vmatmul.mubr.bf16.gmra.mxu0 %v1500
      %v1542 = vpop.f32.mrf.mxu0
      %v1543 = vadd.f32 0.0, %v1542
      %v1544 = vpop.f32.mrf.mxu0
      %v1545 = vpop.f32.mrf.mxu0
      %v1546 = vadd.f32 0.0, %v1545
      %v1547 = vpop.f32.mrf.mxu0
      %1548 = vmatprep.mubr.bf16.mxu0 0
      %1549 = vmatmul.mubr.bf16.gmra.mxu0 %v1503
      %v1550 = vpop.f32.mrf.mxu0
      %v1551 = vadd.f32 0.0, %v1550
      %v1552 = vpop.f32.mrf.mxu0
      %v1553 = vpop.f32.mrf.mxu0
      %v1554 = vpop.f32.mrf.mxu0
      %1555 = vdwg.mxu0
      %1556 = vrot.lane.b32.xlu0 %v944, 64
      %v1557 = vpop.permute.xlu0 %1556
      %1558 = vrot.lane.b32.xlu0 %v945, 64
      %v1559 = vpop.permute.xlu0 %1558
      %v1562 = vsel %vm1228, %v1367, 0
      %v1565 = vsel %vm1228, %v1368, 0
      %v1568 = vsel %vm1380, %v1559, 0
      %1570 = vmatprep.subr.bf16.mxu0 0
      %1571 = vmatpush1.bf16.msra.mxu0 0
      %1572 = vmatprep.subr.bf16.mxu0 0
      %1573 = vmatpush1.bf16.msra.mxu0 0
      %1574 = vmatprep.subr.bf16.mxu0 0
      %1575 = vmatpush1.bf16.msra.mxu0 0
      %1576 = vmatprep.subr.bf16.mxu0 0
      %1577 = vmatpush1.bf16.msra.mxu0 0
      %1578 = vmatprep.subr.bf16.mxu0 0
      %1579 = vmatpush1.bf16.msra.mxu0 0
      %1580 = vmatprep.subr.bf16.mxu0 0
      %1581 = vmatpush1.bf16.msra.mxu0 0
      %1582 = vmatprep.subr.bf16.mxu0 0
      %1583 = vmatpush1.bf16.msra.mxu0 %v1568
      %1584 = vmatprep.subr.bf16.mxu0 0
      %1585 = vmatpush1.bf16.msra.mxu0 %v1557
      %1586 = vmatprep.subr.bf16.mxu0 0
      %1587 = vmatpush2.bf16.msra.mxu0 0
      %1588 = vmatprep.subr.bf16.mxu0 0
      %1589 = vmatpush2.bf16.msra.mxu0 0
      %1590 = vmatprep.subr.bf16.mxu0 0
      %1591 = vmatpush2.bf16.msra.mxu0 0
      %1592 = vmatprep.subr.bf16.mxu0 0
      %1593 = vmatpush2.bf16.msra.mxu0 0
      %1594 = vmatprep.subr.bf16.mxu0 0
      %1595 = vmatpush2.bf16.msra.mxu0 0
      %1596 = vmatprep.subr.bf16.mxu0 0
      %1597 = vmatpush2.bf16.msra.mxu0 0
      %1598 = vmatprep.subr.bf16.mxu0 0
      %1599 = vmatpush2.bf16.msra.mxu0 0
      %1600 = vmatprep.subr.bf16.mxu0 0
      %1601 = vmatpush2.bf16.msra.mxu0 0
      %1602 = vmatprep.mubr.bf16.mxu0 0
      %1603 = vmatmul.mubr.bf16.gmra.mxu0 %v1562
      %v1604 = vpop.f32.mrf.mxu0
      %v1605 = vadd.f32 0.0, %v1604
      %v1606 = vpop.f32.mrf.mxu0
      %v1607 = vpop.f32.mrf.mxu0
      %v1608 = vadd.f32 0.0, %v1607
      %v1609 = vpop.f32.mrf.mxu0
      %1610 = vmatprep.mubr.bf16.mxu0 0
      %1611 = vmatmul.mubr.bf16.gmra.mxu0 %v1565
      %v1612 = vpop.f32.mrf.mxu0
      %v1613 = vadd.f32 0.0, %v1612
      %v1614 = vpop.f32.mrf.mxu0
      %v1615 = vpop.f32.mrf.mxu0
      %v1616 = vpop.f32.mrf.mxu0
      %1617 = vdwg.mxu0
      %1621 = vrot.lane.b32.xlu0 %v1481, 8
      %v1622 = vpop.permute.xlu0 %1621
      %1623 = vrot.lane.b32.xlu0 %v1484, 8
      %v1624 = vpop.permute.xlu0 %1623
      %1625 = vrot.lane.b32.xlu0 %v1489, 8
      %v1626 = vpop.permute.xlu0 %1625
      %1633 = vrot.lane.b32.xlu0 %v1543, 16
      %v1634 = vpop.permute.xlu0 %1633
      %1635 = vrot.lane.b32.xlu0 %v1546, 16
      %v1636 = vpop.permute.xlu0 %1635
      %1637 = vrot.lane.b32.xlu0 %v1551, 16
      %v1638 = vpop.permute.xlu0 %1637
      %1645 = vrot.lane.b32.xlu0 %v1605, 24
      %v1646 = vpop.permute.xlu0 %1645
      %1647 = vrot.lane.b32.xlu0 %v1608, 24
      %v1648 = vpop.permute.xlu0 %1647
      %1649 = vrot.lane.b32.xlu0 %v1613, 24
      %v1650 = vpop.permute.xlu0 %1649
      %v1654 = vsel %vm952, %v1419, %v1622
      %v1655 = vsel %vm952, %v1422, %v1624
      %v1656 = vsel %vm952, %v1427, %v1626
      %vm1657 = vcmask 130048
      %v1658 = vsel %vm1657, %v1654, %v1634
      %v1659 = vsel %vm1657, %v1655, %v1636
      %v1660 = vsel %vm1657, %v1656, %v1638
      %v1661 = vsel %vm1228, %v1658, %v1646
      %v1662 = vsel %vm1228, %v1659, %v1648
      %v1663 = vsel %vm1228, %v1660, %v1650
      %v1664 = vpack.c.bf16 %v1662, %v1661
      %v1665 = vpack.c.bf16 %v1663, %v1663
      %v1666 = vld [vmem:[%s723] sm:$0xf]
      %v1667 = vld [vmem:[%s723 + $0x4] sm:$0xf]
      %v1668 = vld [vmem:[%s723 + $0x8] sm:$0xf]
      %v1669 = vld [vmem:[%s723 + $0xc] sm:$0xf]
      %v1674 = vunpack.c.l.b16 %v1666
      %v1675 = vunpack.c.l.b16 %v1667
      %v1676 = vunpack.c.l.b16 %v1668
      %v1677 = vunpack.c.l.b16 %v1669
      %v1678 = vpack.c.b16 %v1675, %v1674
      %v1679 = vpack.c.b16 %v1677, %v1676
      %v1683 = vsel %vm770, %v1664, 0
      %v1686 = vsel %vm770, %v1665, 0
      %1688 = vmatprep.subr.bf16.mxu0 0
      %1689 = vmatpush1.bf16.msra.mxu0 0
      %1690 = vmatprep.subr.bf16.mxu0 0
      %1691 = vmatpush1.bf16.msra.mxu0 0
      %1692 = vmatprep.subr.bf16.mxu0 0
      %1693 = vmatpush1.bf16.msra.mxu0 0
      %1694 = vmatprep.subr.bf16.mxu0 0
      %1695 = vmatpush1.bf16.msra.mxu0 0
      %1696 = vmatprep.subr.bf16.mxu0 0
      %1697 = vmatpush1.bf16.msra.mxu0 0
      %1698 = vmatprep.subr.bf16.mxu0 0
      %1699 = vmatpush1.bf16.msra.mxu0 0
      %1700 = vmatprep.subr.bf16.mxu0 0
      %1701 = vmatpush1.bf16.msra.mxu0 %v1679
      %1702 = vmatprep.subr.bf16.mxu0 0
      %1703 = vmatpush1.bf16.msra.mxu0 %v1678
      %1704 = vmatprep.subr.bf16.mxu0 0
      %1705 = vmatpush2.bf16.msra.mxu0 0
      %1706 = vmatprep.subr.bf16.mxu0 0
      %1707 = vmatpush2.bf16.msra.mxu0 0
      %1708 = vmatprep.subr.bf16.mxu0 0
      %1709 = vmatpush2.bf16.msra.mxu0 0
      %1710 = vmatprep.subr.bf16.mxu0 0
      %1711 = vmatpush2.bf16.msra.mxu0 0
      %1712 = vmatprep.subr.bf16.mxu0 0
      %1713 = vmatpush2.bf16.msra.mxu0 0
      %1714 = vmatprep.subr.bf16.mxu0 0
      %1715 = vmatpush2.bf16.msra.mxu0 0
      %1716 = vmatprep.subr.bf16.mxu0 0
      %1717 = vmatpush2.bf16.msra.mxu0 0
      %1718 = vmatprep.subr.bf16.mxu0 0
      %1719 = vmatpush2.bf16.msra.mxu0 0
      %1720 = vmatprep.mubr.bf16.mxu0 0
      %1721 = vmatmul.mubr.bf16.gmra.mxu0 %v1683
      %v1722 = vpop.f32.mrf.mxu0
      %v1723 = vadd.f32 0.0, %v1722
      %v1724 = vpop.f32.mrf.mxu0
      %v1725 = vpop.f32.mrf.mxu0
      %v1726 = vadd.f32 0.0, %v1725
      %v1727 = vpop.f32.mrf.mxu0
      %1728 = vmatprep.mubr.bf16.mxu0 0
      %1729 = vmatmul.mubr.bf16.gmra.mxu0 %v1686
      %v1730 = vpop.f32.mrf.mxu0
      %v1731 = vadd.f32 0.0, %v1730
      %v1732 = vpop.f32.mrf.mxu0
      %v1733 = vpop.f32.mrf.mxu0
      %v1734 = vpop.f32.mrf.mxu0
      %1735 = vdwg.mxu0
      %v1736 = vadd.f32 %v765, %v1723
      %v1737 = vadd.f32 %v766, %v1726
      %v1738 = vadd.f32 %v767, %v1731
      %v1739 = vld [vmem:[%s726] sm:$0x1]
      %v1741 = vlaneseq
      %v1742 = vshrl.u32 %v1741, 7
      %v1743 = vsub.s32 0, %v1742
      %v1744 = vrot.slane %v1739, %v1743
      %v1746 = vadd.f32 %v1736, %v1744
      %v1747 = vadd.f32 %v1737, %v1744
      %v1748 = vadd.f32 %v1738, %v1744
      %v1749 = vld [vmem:[%s729] sm:$0x1]
      %v1750 = vld [vmem:[%s732] sm:$0x1]
      %v1751 = vsel %vm770, %v1746, 0.0
      %1752 = vadd.xlane.f32.xlu0 %v1751
      %v1753 = vpop.xlane.xlu0 %1752
      %v1754 = vsel %vm770, %v1747, 0.0
      %1755 = vadd.xlane.f32.xlu0 %v1754
      %v1756 = vpop.xlane.xlu0 %1755
      %v1757 = vsel %vm770, %v1748, 0.0
      %1758 = vadd.xlane.f32.xlu0 %v1757
      %v1759 = vpop.xlane.xlu0 %1758
      %v1760 = vmul.f32 %v1753, %v780
      %v1761 = vmul.f32 %v1756, %v780
      %v1762 = vmul.f32 %v1759, %v780
      %v1763 = vsub.f32 %v1746, %v1760
      %v1764 = vsub.f32 %v1747, %v1761
      %v1765 = vsub.f32 %v1748, %v1762
      %v1766 = vmul.f32 %v1763, %v1763
      %v1767 = vmul.f32 %v1764, %v1764
      %v1768 = vmul.f32 %v1765, %v1765
      %v1769 = vsel %vm770, %v1766, 0.0
      %1770 = vadd.xlane.f32.xlu0 %v1769
      %v1771 = vpop.xlane.xlu0 %1770
      %v1772 = vsel %vm770, %v1767, 0.0
      %1773 = vadd.xlane.f32.xlu0 %v1772
      %v1774 = vpop.xlane.xlu0 %1773
      %v1775 = vsel %vm770, %v1768, 0.0
      %1776 = vadd.xlane.f32.xlu0 %v1775
      %v1777 = vpop.xlane.xlu0 %1776
      %v1778 = vmul.f32 %v1771, %v780
      %v1779 = vmul.f32 %v1774, %v780
      %v1780 = vmul.f32 %v1777, %v780
      %v1781 = vadd.f32 %v1778, 1e-05
      %v1782 = vadd.f32 %v1779, 1e-05
      %v1783 = vadd.f32 %v1780, 1e-05
      %v1784 = vrsqrt.pop %v1781
      %v1785 = vrsqrt.pop %v1782
      %v1786 = vrsqrt.pop %v1783
      %v1787 = vmul.f32 %v1763, %v1784
      %v1788 = vmul.f32 %v1764, %v1785
      %v1789 = vmul.f32 %v1765, %v1786
      %v1791 = vlaneseq
      %v1792 = vshrl.u32 %v1791, 7
      %v1793 = vsub.s32 0, %v1792
      %v1794 = vrot.slane %v1749, %v1793
      %v1796 = vmul.f32 %v1787, %v1794
      %v1797 = vmul.f32 %v1788, %v1794
      %v1798 = vmul.f32 %v1789, %v1794
      %v1800 = vlaneseq
      %v1801 = vshrl.u32 %v1800, 7
      %v1802 = vsub.s32 0, %v1801
      %v1803 = vrot.slane %v1750, %v1802
      %v1805 = vadd.f32 %v1796, %v1803
      %v1806 = vadd.f32 %v1797, %v1803
      %v1807 = vadd.f32 %v1798, %v1803
      %v1808 = vpack.c.bf16 %v1806, %v1805
      %v1809 = vpack.c.bf16 %v1807, %v1807
      %v1810 = vld [vmem:[%s737] sm:$0xf]
      %v1811 = vld [vmem:[%s737 + $0x4] sm:$0xf]
      %v1812 = vld [vmem:[%s737 + $0x8] sm:$0xf]
      %v1813 = vld [vmem:[%s737 + $0xc] sm:$0xf]
      %v1814 = vld [vmem:[%s740] sm:$0x1]
      %v1816 = vlaneseq
      %v1817 = vshrl.u32 %v1816, 7
      %v1818 = vsub.s32 0, %v1817
      %v1819 = vrot.slane %v1814, %v1818
      %v1825 = vunpack.c.l.b16 %v1810
      %v1826 = vunpack.c.l.b16 %v1811
      %v1827 = vunpack.c.l.b16 %v1812
      %v1828 = vunpack.c.l.b16 %v1813
      %v1829 = vpack.c.b16 %v1826, %v1825
      %v1830 = vpack.c.b16 %v1828, %v1827
      %v1834 = vsel %vm770, %v1808, 0
      %v1837 = vsel %vm770, %v1809, 0
      %1839 = vmatprep.subr.bf16.mxu0 0
      %1840 = vmatpush1.bf16.msra.mxu0 0
      %1841 = vmatprep.subr.bf16.mxu0 0
      %1842 = vmatpush1.bf16.msra.mxu0 0
      %1843 = vmatprep.subr.bf16.mxu0 0
      %1844 = vmatpush1.bf16.msra.mxu0 0
      %1845 = vmatprep.subr.bf16.mxu0 0
      %1846 = vmatpush1.bf16.msra.mxu0 0
      %1847 = vmatprep.subr.bf16.mxu0 0
      %1848 = vmatpush1.bf16.msra.mxu0 0
      %1849 = vmatprep.subr.bf16.mxu0 0
      %1850 = vmatpush1.bf16.msra.mxu0 0
      %1851 = vmatprep.subr.bf16.mxu0 0
      %1852 = vmatpush1.bf16.msra.mxu0 %v1830
      %1853 = vmatprep.subr.bf16.mxu0 0
      %1854 = vmatpush1.bf16.msra.mxu0 %v1829
      %1855 = vmatprep.subr.bf16.mxu0 0
      %1856 = vmatpush2.bf16.msra.mxu0 0
      %1857 = vmatprep.subr.bf16.mxu0 0
      %1858 = vmatpush2.bf16.msra.mxu0 0
      %1859 = vmatprep.subr.bf16.mxu0 0
      %1860 = vmatpush2.bf16.msra.mxu0 0
      %1861 = vmatprep.subr.bf16.mxu0 0
      %1862 = vmatpush2.bf16.msra.mxu0 0
      %1863 = vmatprep.subr.bf16.mxu0 0
      %1864 = vmatpush2.bf16.msra.mxu0 0
      %1865 = vmatprep.subr.bf16.mxu0 0
      %1866 = vmatpush2.bf16.msra.mxu0 0
      %1867 = vmatprep.subr.bf16.mxu0 0
      %1868 = vmatpush2.bf16.msra.mxu0 0
      %1869 = vmatprep.subr.bf16.mxu0 0
      %1870 = vmatpush2.bf16.msra.mxu0 0
      %1871 = vmatprep.mubr.bf16.mxu0 0
      %1872 = vmatmul.mubr.bf16.gmra.mxu0 %v1834
      %v1873 = vpop.f32.mrf.mxu0
      %v1874 = vadd.f32 %v1819, %v1873
      %v1875 = vpop.f32.mrf.mxu0
      %v1876 = vpop.f32.mrf.mxu0
      %v1877 = vadd.f32 %v1819, %v1876
      %v1878 = vpop.f32.mrf.mxu0
      %1879 = vmatprep.mubr.bf16.mxu0 0
      %1880 = vmatmul.mubr.bf16.gmra.mxu0 %v1837
      %v1881 = vpop.f32.mrf.mxu0
      %v1882 = vadd.f32 %v1819, %v1881
      %v1883 = vpop.f32.mrf.mxu0
      %v1884 = vpop.f32.mrf.mxu0
      %v1885 = vpop.f32.mrf.mxu0
      %1886 = vdwg.mxu0
      %v1887 = vmul.f32 %v1874, 0.5
      %v1888 = vmul.f32 %v1877, 0.5
      %v1889 = vmul.f32 %v1882, 0.5
      %v1890 = vmul.f32 %v1874, %v1874
      %v1891 = vmul.f32 %v1877, %v1877
      %v1892 = vmul.f32 %v1882, %v1882
      %v1893 = vmul.f32 %v1890, %v1874
      %v1894 = vmul.f32 %v1891, %v1877
      %v1895 = vmul.f32 %v1892, %v1882
      %v1896 = vmul.f32 %v1893, 0.044715
      %v1897 = vmul.f32 %v1894, 0.044715
      %v1898 = vmul.f32 %v1895, 0.044715
      %v1899 = vadd.f32 %v1874, %v1896
      %v1900 = vadd.f32 %v1877, %v1897
      %v1901 = vadd.f32 %v1882, %v1898
      %v1902 = vmul.f32 %v1899, 0.7978846
      %v1903 = vmul.f32 %v1900, 0.7978846
      %v1904 = vmul.f32 %v1901, 0.7978846
      %v1905 = vtanh.pop %v1902
      %v1906 = vtanh.pop %v1903
      %v1907 = vtanh.pop %v1904
      %v1908 = vadd.f32 %v1905, 1.0
      %v1909 = vadd.f32 %v1906, 1.0
      %v1910 = vadd.f32 %v1907, 1.0
      %v1911 = vmul.f32 %v1887, %v1908
      %v1912 = vmul.f32 %v1888, %v1909
      %v1913 = vmul.f32 %v1889, %v1910
      %v1914 = vpack.c.bf16 %v1912, %v1911
      %v1915 = vpack.c.bf16 %v1913, %v1913
      %v1916 = vld [vmem:[%s745] sm:$0xf]
      %v1917 = vld [vmem:[%s745 + $0x4] sm:$0xf]
      %v1918 = vld [vmem:[%s745 + $0x8] sm:$0xf]
      %v1919 = vld [vmem:[%s745 + $0xc] sm:$0xf]
      %v1920 = vld [vmem:[%s745 + $0x10] sm:$0xf]
      %v1921 = vld [vmem:[%s745 + $0x14] sm:$0xf]
      %v1922 = vld [vmem:[%s745 + $0x18] sm:$0xf]
      %v1923 = vld [vmem:[%s745 + $0x1c] sm:$0xf]
      %v1932 = vunpack.c.l.b16 %v1916
      %v1933 = vunpack.c.l.b16 %v1917
      %v1934 = vunpack.c.l.b16 %v1918
      %v1935 = vunpack.c.l.b16 %v1919
      %v1936 = vunpack.c.l.b16 %v1920
      %v1937 = vunpack.c.l.b16 %v1921
      %v1938 = vunpack.c.l.b16 %v1922
      %v1939 = vunpack.c.l.b16 %v1923
      %v1940 = vpack.c.b16 %v1933, %v1932
      %v1941 = vpack.c.b16 %v1935, %v1934
      %v1942 = vpack.c.b16 %v1937, %v1936
      %v1943 = vpack.c.b16 %v1939, %v1938
      %vm1948 = vcmask 523264
      %v1950 = vsel %vm1948, %v1914, 0
      %v1953 = vsel %vm1948, %v1915, 0
      %1955 = vmatprep.subr.bf16.mxu0 0
      %1956 = vmatpush1.bf16.msra.mxu0 0
      %1957 = vmatprep.subr.bf16.mxu0 0
      %1958 = vmatpush1.bf16.msra.mxu0 0
      %1959 = vmatprep.subr.bf16.mxu0 0
      %1960 = vmatpush1.bf16.msra.mxu0 0
      %1961 = vmatprep.subr.bf16.mxu0 0
      %1962 = vmatpush1.bf16.msra.mxu0 0
      %1963 = vmatprep.subr.bf16.mxu0 0
      %1964 = vmatpush1.bf16.msra.mxu0 %v1943
      %1965 = vmatprep.subr.bf16.mxu0 0
      %1966 = vmatpush1.bf16.msra.mxu0 %v1942
      %1967 = vmatprep.subr.bf16.mxu0 0
      %1968 = vmatpush1.bf16.msra.mxu0 %v1941
      %1969 = vmatprep.subr.bf16.mxu0 0
      %1970 = vmatpush1.bf16.msra.mxu0 %v1940
      %1971 = vmatprep.subr.bf16.mxu0 0
      %1972 = vmatpush2.bf16.msra.mxu0 0
      %1973 = vmatprep.subr.bf16.mxu0 0
      %1974 = vmatpush2.bf16.msra.mxu0 0
      %1975 = vmatprep.subr.bf16.mxu0 0
      %1976 = vmatpush2.bf16.msra.mxu0 0
      %1977 = vmatprep.subr.bf16.mxu0 0
      %1978 = vmatpush2.bf16.msra.mxu0 0
      %1979 = vmatprep.subr.bf16.mxu0 0
      %1980 = vmatpush2.bf16.msra.mxu0 0
      %1981 = vmatprep.subr.bf16.mxu0 0
      %1982 = vmatpush2.bf16.msra.mxu0 0
      %1983 = vmatprep.subr.bf16.mxu0 0
      %1984 = vmatpush2.bf16.msra.mxu0 0
      %1985 = vmatprep.subr.bf16.mxu0 0
      %1986 = vmatpush2.bf16.msra.mxu0 0
      %1987 = vmatprep.mubr.bf16.mxu0 0
      %1988 = vmatmul.mubr.bf16.gmra.mxu0 %v1950
      %v1989 = vpop.f32.mrf.mxu0
      %v1990 = vadd.f32 0.0, %v1989
      %v1991 = vpop.f32.mrf.mxu0
      %v1992 = vpop.f32.mrf.mxu0
      %v1993 = vadd.f32 0.0, %v1992
      %v1994 = vpop.f32.mrf.mxu0
      %1995 = vmatprep.mubr.bf16.mxu0 0
      %1996 = vmatmul.mubr.bf16.gmra.mxu0 %v1953
      %v1997 = vpop.f32.mrf.mxu0
      %v1998 = vadd.f32 0.0, %v1997
      %v1999 = vpop.f32.mrf.mxu0
      %v2000 = vpop.f32.mrf.mxu0
      %v2001 = vpop.f32.mrf.mxu0
      %2002 = vdwg.mxu0
      %v2003 = vadd.f32 %v1746, %v1990
      %v2004 = vadd.f32 %v1747, %v1993
      %v2005 = vadd.f32 %v1748, %v1998
      %v2006 = vld [vmem:[%s748] sm:$0x1]
      %v2008 = vlaneseq
      %v2009 = vshrl.u32 %v2008, 7
      %v2010 = vsub.s32 0, %v2009
      %v2011 = vrot.slane %v2006, %v2010
      %v2013 = vadd.f32 %v2003, %v2011
      %v2014 = vadd.f32 %v2004, %v2011
      %v2015 = vadd.f32 %v2005, %v2011
      %2016 = vst.msk [vmem:[#allocation2] sm:$0xff] %vm770, %v2013
      %2017 = vst.msk [vmem:[#allocation2 + $0x8] sm:$0xff] %vm770, %v2014
      %2018 = vst.msk [vmem:[#allocation2 + $0x10] sm:$0xff] %vm770, %v2015
      %p2019 = scmp.eq.s32.totalorder %s33, 1
      // Predicated region
      $region93: #{vit_forward.3} parent=87 // pred_check
        %p2020 = pneg %p2019
      $region94: #{vit_forward.3} parent=87 // pred_check_branch
        %2022 = sbr.rel (%p2020) target = $region96
      $region95: #{vit_forward.3} parent=87 // pred_region
        %v2023 = vlaneseq
        %v2024 = vshrl.u32 %v2023, 7
        %v2025 = vmul.u32 %v2024, 24
        %vm2026 = vcmp.eq.s32.totalorder %v2025, %v1212
        %v2027 = vsel %vm2026, 1, 0
        %v2028 = vcvt.s32.f32 %v2027
        %v2030 = vsel %vm1228, %v2028, 0
        %2032 = vmatprep.subr.mxu0 0.0
        %2033 = vmatpush1.msra.mxu0 0.0
        %2034 = vmatprep.subr.mxu0 0.0
        %2035 = vmatpush1.msra.mxu0 0.0
        %2036 = vmatprep.subr.mxu0 0.0
        %2037 = vmatpush1.msra.mxu0 0.0
        %2038 = vmatprep.subr.mxu0 0.0
        %2039 = vmatpush1.msra.mxu0 0.0
        %2040 = vmatprep.subr.mxu0 0.0
        %2041 = vmatpush1.msra.mxu0 0.0
        %2042 = vmatprep.subr.mxu0 0.0
        %2043 = vmatpush1.msra.mxu0 0.0
        %2044 = vmatprep.subr.mxu0 0.0
        %2045 = vmatpush1.msra.mxu0 0.0
        %2046 = vmatprep.subr.mxu0 0.0
        %2047 = vmatpush1.msra.mxu0 0.0
        %2048 = vmatprep.subr.mxu0 0.0
        %2049 = vmatpush1.msra.mxu0 0.0
        %2050 = vmatprep.subr.mxu0 0.0
        %2051 = vmatpush1.msra.mxu0 0.0
        %2052 = vmatprep.subr.mxu0 0.0
        %2053 = vmatpush1.msra.mxu0 0.0
        %2054 = vmatprep.subr.mxu0 0.0
        %2055 = vmatpush1.msra.mxu0 0.0
        %2056 = vmatprep.subr.mxu0 0.0
        %2057 = vmatpush1.msra.mxu0 0.0
        %2058 = vmatprep.subr.mxu0 0.0
        %2059 = vmatpush1.msra.mxu0 %v2015
        %2060 = vmatprep.subr.mxu0 0.0
        %2061 = vmatpush1.msra.mxu0 %v2014
        %2062 = vmatprep.subr.mxu0 0.0
        %2063 = vmatpush1.msra.mxu0 %v2013
        %2064 = vmatprep.subr.mxu0 0.0
        %2065 = vmatpush2.msra.mxu0 0.0
        %2066 = vmatprep.subr.mxu0 0.0
        %2067 = vmatpush2.msra.mxu0 0.0
        %2068 = vmatprep.subr.mxu0 0.0
        %2069 = vmatpush2.msra.mxu0 0.0
        %2070 = vmatprep.subr.mxu0 0.0
        %2071 = vmatpush2.msra.mxu0 0.0
        %2072 = vmatprep.subr.mxu0 0.0
        %2073 = vmatpush2.msra.mxu0 0.0
        %2074 = vmatprep.subr.mxu0 0.0
        %2075 = vmatpush2.msra.mxu0 0.0
        %2076 = vmatprep.subr.mxu0 0.0
        %2077 = vmatpush2.msra.mxu0 0.0
        %2078 = vmatprep.subr.mxu0 0.0
        %2079 = vmatpush2.msra.mxu0 0.0
        %2080 = vmatprep.subr.mxu0 0.0
        %2081 = vmatpush2.msra.mxu0 0.0
        %2082 = vmatprep.subr.mxu0 0.0
        %2083 = vmatpush2.msra.mxu0 0.0
        %2084 = vmatprep.subr.mxu0 0.0
        %2085 = vmatpush2.msra.mxu0 0.0
        %2086 = vmatprep.subr.mxu0 0.0
        %2087 = vmatpush2.msra.mxu0 0.0
        %2088 = vmatprep.subr.mxu0 0.0
        %2089 = vmatpush2.msra.mxu0 0.0
        %2090 = vmatprep.subr.mxu0 0.0
        %2091 = vmatpush2.msra.mxu0 0.0
        %2092 = vmatprep.subr.mxu0 0.0
        %2093 = vmatpush2.msra.mxu0 0.0
        %2094 = vmatprep.subr.mxu0 0.0
        %2095 = vmatpush2.msra.mxu0 0.0
        %2096 = vmatprep.mubr.f32.mxu0 0.0
        %2097 = vmatmul.mubr.f32.gmra.mxu0 %v2030
        %v2098 = vpop.f32.mrf.mxu0
        %v2099 = vadd.f32 0.0, %v2098
        %v2100 = vpop.f32.mrf.mxu0
        %2101 = vdwg.mxu0
        %v2102 = vld [vmem:[%s13] sm:$0x1]
        %v2103 = vld [vmem:[%s14] sm:$0x1]
        %v2104 = vsel %vm770, %v2099, 0.0
        %2105 = vadd.xlane.f32.xlu0 %v2104
        %v2106 = vpop.xlane.xlu0 %2105
        %v2107 = vmul.f32 %v2106, %v780
        %v2108 = vsub.f32 %v2099, %v2107
        %v2109 = vmul.f32 %v2108, %v2108
        %v2110 = vsel %vm770, %v2109, 0.0
        %2111 = vadd.xlane.f32.xlu0 %v2110
        %v2112 = vpop.xlane.xlu0 %2111
        %v2113 = vmul.f32 %v2112, %v780
        %v2114 = vadd.f32 %v2113, 1e-05
        %v2115 = vrsqrt.pop %v2114
        %v2116 = vmul.f32 %v2108, %v2115
        %v2118 = vlaneseq
        %v2119 = vshrl.u32 %v2118, 7
        %v2120 = vsub.s32 0, %v2119
        %v2121 = vrot.slane %v2102, %v2120
        %v2123 = vmul.f32 %v2116, %v2121
        %v2125 = vlaneseq
        %v2126 = vshrl.u32 %v2125, 7
        %v2127 = vsub.s32 0, %v2126
        %v2128 = vrot.slane %v2103, %v2127
        %v2130 = vadd.f32 %v2123, %v2128
        %v2131 = vpack.c.bf16 %v2130, %v2130
        %v2132 = vld [vmem:[%s15] sm:$0xf]
        %v2133 = vld [vmem:[%s15 + $0x4] sm:$0xf]
        %v2134 = vld [vmem:[%s15 + $0x8] sm:$0xf]
        %v2135 = vld [vmem:[%s15 + $0xc] sm:$0xf]
        %v2136 = vld [vmem:[%s16] sm:$0x1]
        %v2138 = vlaneseq
        %v2139 = vshrl.u32 %v2138, 7
        %v2140 = vsub.s32 0, %v2139
        %v2141 = vrot.slane %v2136, %v2140
        %v2147 = vunpack.c.l.b16 %v2132
        %v2148 = vunpack.c.l.b16 %v2133
        %v2149 = vunpack.c.l.b16 %v2134
        %v2150 = vunpack.c.l.b16 %v2135
        %v2151 = vpack.c.b16 %v2148, %v2147
        %v2152 = vpack.c.b16 %v2150, %v2149
        %v2156 = vsel %vm770, %v2131, 0
        %2158 = vmatprep.subr.bf16.mxu0 0
        %2159 = vmatpush1.bf16.msra.mxu0 0
        %2160 = vmatprep.subr.bf16.mxu0 0
        %2161 = vmatpush1.bf16.msra.mxu0 0
        %2162 = vmatprep.subr.bf16.mxu0 0
        %2163 = vmatpush1.bf16.msra.mxu0 0
        %2164 = vmatprep.subr.bf16.mxu0 0
        %2165 = vmatpush1.bf16.msra.mxu0 0
        %2166 = vmatprep.subr.bf16.mxu0 0
        %2167 = vmatpush1.bf16.msra.mxu0 0
        %2168 = vmatprep.subr.bf16.mxu0 0
        %2169 = vmatpush1.bf16.msra.mxu0 0
        %2170 = vmatprep.subr.bf16.mxu0 0
        %2171 = vmatpush1.bf16.msra.mxu0 %v2152
        %2172 = vmatprep.subr.bf16.mxu0 0
        %2173 = vmatpush1.bf16.msra.mxu0 %v2151
        %2174 = vmatprep.subr.bf16.mxu0 0
        %2175 = vmatpush2.bf16.msra.mxu0 0
        %2176 = vmatprep.subr.bf16.mxu0 0
        %2177 = vmatpush2.bf16.msra.mxu0 0
        %2178 = vmatprep.subr.bf16.mxu0 0
        %2179 = vmatpush2.bf16.msra.mxu0 0
        %2180 = vmatprep.subr.bf16.mxu0 0
        %2181 = vmatpush2.bf16.msra.mxu0 0
        %2182 = vmatprep.subr.bf16.mxu0 0
        %2183 = vmatpush2.bf16.msra.mxu0 0
        %2184 = vmatprep.subr.bf16.mxu0 0
        %2185 = vmatpush2.bf16.msra.mxu0 0
        %2186 = vmatprep.subr.bf16.mxu0 0
        %2187 = vmatpush2.bf16.msra.mxu0 0
        %2188 = vmatprep.subr.bf16.mxu0 0
        %2189 = vmatpush2.bf16.msra.mxu0 0
        %2190 = vmatprep.mubr.bf16.mxu0 0
        %2191 = vmatmul.mubr.bf16.gmra.mxu0 %v2156
        %v2192 = vpop.f32.mrf.mxu0
        %v2193 = vadd.f32 %v2141, %v2192
        %v2194 = vpop.f32.mrf.mxu0
        %v2195 = vpop.f32.mrf.mxu0
        %v2196 = vpop.f32.mrf.mxu0
        %2197 = vdwg.mxu0
        %2198 = vst [vmem:[%s752] sm:$0xff] %v2193
      $region96: #{vit_forward.3} parent=87 // pred_fallthru
        _
      %p2199 = scmp.lt.s32.totalorder %s32, 1
      %s2200 = scalar_select %p2199, %s32, 1
      %s2201 = smul.addr %s2200, 8
      %s2202 = scalar_lea.vmem %s17, %s2201
      // Predicated region
      $region97: #{vit_forward.3} parent=87 // pred_check
        %p2203 = pneg %p480
      $region98: #{vit_forward.3} parent=87 // pred_check_branch
        %2205 = sbr.rel (%p2203) target = $region100
      $region99: #{vit_forward.3} parent=87 // pred_region
        _
      $region100: #{vit_forward.3} parent=87 // pred_fallthru
        _
    $region88: #{vit_forward.3} parent=5 // pred_fallthru
      _
    %p2206 = scmp.le.s32.totalorder 2, %s23
    // Predicated region
    $region101: #{vit_forward.3} parent=5 // pred_check
      %p2207 = pneg %p2206
    $region102: #{vit_forward.3} parent=5 // pred_check_branch
      %2209 = sbr.rel (%p2207) target = $region104
    $region103: #{vit_forward.3} parent=5 // pred_region
      %s2210 = ssub.s32 %s23, 2
      // Predicated region
      $region105: #{vit_forward.3} parent=103 // pred_check
        %p2211 = pneg %p486
      $region106: #{vit_forward.3} parent=103 // pred_check_branch
        %2213 = sbr.rel (%p2211) target = $region108
      $region107: #{vit_forward.3} parent=103 // pred_region
        %p2214 = scmp.lt.s32.totalorder %s34, 1
        %s2215 = scalar_select %p2214, %s34, 1
        %s2216 = smul.addr %s2215, 8
        %s2217 = scalar_lea.vmem %s17, %s2216
      $region108: #{vit_forward.3} parent=103 // pred_fallthru
        _
    $region104: #{vit_forward.3} parent=5 // pred_fallthru
      _
  $region6: #{vit_forward.3} parent=0 // loop_footer
    %s27 = sadd.s32 1, %s23
  $region7: #{vit_forward.3} parent=0 // loop_footer_branch
    %22 = sbr.rel target = $region3
  $region8: #{vit_forward.3} parent=0 // loop_exit
    _

</llo_original>
